<compile_context>
chip_gen: v7x
topology: tpu7x:2x2x1
jax: 0.10.0
libtpu: 0.0.40
codegen_flags: <defaults>
</compile_context>

<pallas_src>
import functools

import jax
import jax.numpy as jnp
from jax.experimental import pallas as pl
from jax.experimental.pallas import tpu as pltpu

LANE = 128
SUBLANE = 8


# ----------------------------------------------------------------------------
# Fused kernel
# ----------------------------------------------------------------------------
def gin2_fused_kernel(eps_ref, adj_ref, x_ref,
                      w1s_ref, b1s_ref, w2s_ref, b2s_ref, scale_ref, shift_ref,
                      pool_ref, l1w_ref, l1b_ref, l2w_ref, l2b_ref,
                      out_ref, *, num_layers, num_classes):
    """Entire GIN_2 forward: L x (aggregate -> MLP -> BN) -> pool -> head."""
    adj = adj_ref[...]          # [Np, Np]   bf16 (exact integer edge counts)
    h = x_ref[...]              # [Np, Dp]   f32, stays resident on-chip

    # Unrolled over the (static, small) number of GIN layers.
    for l in range(num_layers):
        self_w = 1.0 + eps_ref[l]                      # per-layer eps from SMEM
        # Aggregation: MXU in bf16, accumulate + self term in f32.
        agg = jnp.dot(adj, h.astype(jnp.bfloat16),
                      preferred_element_type=jnp.float32) + self_w * h
        z = jnp.dot(agg.astype(jnp.bfloat16), w1s_ref[l],
                    preferred_element_type=jnp.float32) + b1s_ref[l]
        z = jnp.maximum(z, 0.0)
        z = jnp.dot(z.astype(jnp.bfloat16), w2s_ref[l],
                    preferred_element_type=jnp.float32) + b2s_ref[l]
        z = jnp.maximum(z, 0.0)
        # BatchNorm1d (eval mode) folded into per-channel scale/shift (f32).
        h = z * scale_ref[l] + shift_ref[l]

    # global_mean_pool as a pooling matmul: pool[g, i] = [batch[i]==g]/|g|
    pooled = jnp.dot(pool_ref[...], h.astype(jnp.bfloat16),
                     preferred_element_type=jnp.float32)
    t = jnp.dot(pooled.astype(jnp.bfloat16), l1w_ref[...],
                preferred_element_type=jnp.float32) + l1b_ref[...]
    t = jnp.maximum(t, 0.0)
    # dropout(p=0.5, training=False) -> identity
    logits = jnp.dot(t.astype(jnp.bfloat16), l2w_ref[...],
                     preferred_element_type=jnp.float32) + l2b_ref[...]

    # Mask padded class lanes so log_softmax only normalizes over real classes.
    col = jax.lax.broadcasted_iota(jnp.int32, logits.shape, 1)
    logits = jnp.where(col < num_classes, logits, -1e30)
    m = jnp.max(logits, axis=-1, keepdims=True)
    zc = logits - m
    lse = jnp.log(jnp.sum(jnp.exp(zc), axis=-1, keepdims=True))
    out_ref[...] = zc - lse


# ----------------------------------------------------------------------------
# Host-side helpers
# ----------------------------------------------------------------------------
def _round_up(x, m):
    return ((x + m - 1) // m) * m


def _pad2(a, shape):
    return jnp.pad(a, [(0, t - s) for s, t in zip(a.shape, shape)])


# ----------------------------------------------------------------------------
# Parameter construction (deterministic, synthetic)
# ----------------------------------------------------------------------------
def _init_linear(key, fan_in, fan_out):
    kw, kb = jax.random.split(key)
    w = jax.random.normal(kw, (fan_in, fan_out), jnp.float32) * (1.0 / jnp.sqrt(fan_in))
    b = jax.random.normal(kb, (1, fan_out), jnp.float32) * 0.01
    return w, b


def _init_gin_layer(key, fan_in, hidden):
    k1, k2, k3 = jax.random.split(key, 3)
    w1, b1 = _init_linear(k1, fan_in, hidden)
    w2, b2 = _init_linear(k2, hidden, hidden)
    # BatchNorm1d(hidden): gamma, beta, running_mean, running_var (eval mode).
    kg, kb_, km, kv = jax.random.split(k3, 4)
    gamma = 1.0 + 0.1 * jax.random.normal(kg, (1, hidden), jnp.float32)
    beta = 0.1 * jax.random.normal(kb_, (1, hidden), jnp.float32)
    run_mean = 0.1 * jax.random.normal(km, (1, hidden), jnp.float32)
    run_var = 1.0 + 0.1 * jax.random.uniform(kv, (1, hidden), jnp.float32)
    bn_eps = 1e-5
    scale = gamma / jnp.sqrt(run_var + bn_eps)
    shift = beta - run_mean * scale
    eps = jnp.float32(0.0)  # GIN train_eps=True initialized to 0.
    return dict(w1=w1, b1=b1, w2=w2, b2=b2, scale=scale, shift=shift, eps=eps)


def init_gin2_params(key, num_features, hidden, num_classes, num_layers):
    keys = jax.random.split(key, num_layers + 2)
    conv1 = _init_gin_layer(keys[0], num_features, hidden)
    convs = [_init_gin_layer(keys[i + 1], hidden, hidden)
             for i in range(num_layers - 1)]
    lin1_w, lin1_b = _init_linear(keys[num_layers], hidden, hidden)
    lin2_w, lin2_b = _init_linear(keys[num_layers + 1], hidden, num_classes)
    return dict(conv1=conv1, convs=convs,
                lin1=(lin1_w, lin1_b), lin2=(lin2_w, lin2_b))


# ----------------------------------------------------------------------------
# Forward (single fused pallas_call)
# ----------------------------------------------------------------------------
def gin2_forward(params, x, edge_index, batch, num_graphs):
    n, f = x.shape
    hidden = params["lin1"][0].shape[0]
    n_classes = params["lin2"][0].shape[1]
    layers = [params["conv1"]] + list(params["convs"])
    num_layers = len(layers)

    dp = _round_up(max(f, hidden), LANE)     # lane-dense working feature width
    np_ = _round_up(n, SUBLANE)              # node axis only needs sublane padding
    gp = _round_up(num_graphs, SUBLANE)      # padded graph count (sublane axis)
    cp = _round_up(n_classes, LANE)          # padded class count (lane axis)

    # Dense adjacency: A[i, j] counts edges j -> i (scatter-add, plain-JAX glue),
    # built once at padded size.  Columns of padded nodes are exactly zero.
    # Cast to bf16 for the MXU (exact for integer counts <= 256).
    src, dst = edge_index[0], edge_index[1]
    adj = jnp.zeros((np_, np_), jnp.float32).at[dst, src].add(1.0)
    adj = adj.astype(jnp.bfloat16)

    x_p = _pad2(x.astype(jnp.float32), (np_, dp))

    # Stack per-layer weights (all layers share the padded [Dp, Dp] shape).
    # MXU operands in bf16; bias / BN scale-shift stay f32 (VPU path).
    w1s = jnp.stack([_pad2(p["w1"], (dp, dp)) for p in layers]).astype(jnp.bfloat16)
    b1s = jnp.stack([_pad2(p["b1"], (1, dp)) for p in layers])
    w2s = jnp.stack([_pad2(p["w2"], (dp, dp)) for p in layers]).astype(jnp.bfloat16)
    b2s = jnp.stack([_pad2(p["b2"], (1, dp)) for p in layers])
    scales = jnp.stack([_pad2(p["scale"], (1, dp)) for p in layers])
    shifts = jnp.stack([_pad2(p["shift"], (1, dp)) for p in layers])
    eps = jnp.stack([p["eps"] for p in layers]).astype(jnp.float32)

    # global_mean_pool as a pooling matmul: P[g, i] = [batch[i]==g] / count_g
    # Columns of padded nodes / rows of padded graphs are zero.
    one_hot = (batch[None, :] == jnp.arange(num_graphs)[:, None]).astype(jnp.float32)
    counts = jnp.maximum(one_hot.sum(axis=1, keepdims=True), 1.0)
    pool = _pad2(one_hot / counts, (gp, np_)).astype(jnp.bfloat16)

    l1w = _pad2(params["lin1"][0], (dp, dp)).astype(jnp.bfloat16)
    l1b = _pad2(params["lin1"][1], (1, dp))
    l2w = _pad2(params["lin2"][0], (dp, cp)).astype(jnp.bfloat16)
    l2b = _pad2(params["lin2"][1], (1, cp))

    kernel = functools.partial(gin2_fused_kernel,
                               num_layers=num_layers, num_classes=n_classes)
    vmem = pl.BlockSpec(memory_space=pltpu.MemorySpace.VMEM)
    smem = pl.BlockSpec(memory_space=pltpu.MemorySpace.SMEM)

    out_p = pl.pallas_call(
        kernel,
        out_shape=jax.ShapeDtypeStruct((gp, cp), jnp.float32),
        in_specs=[smem] + [vmem] * 13,
        out_specs=vmem,
    )(eps, adj, x_p, w1s, b1s, w2s, b2s, scales, shifts,
      pool, l1w, l1b, l2w, l2b)

    return out_p[:num_graphs, :n_classes]


# ----------------------------------------------------------------------------
# Pure-JAX reference (mirrors the kernel's bf16-operand / f32-accumulate dots)
# ----------------------------------------------------------------------------
def _bdot(a, b):
    return jnp.dot(a.astype(jnp.bfloat16), b.astype(jnp.bfloat16),
                   preferred_element_type=jnp.float32)


def gin2_reference(params, x, edge_index, batch, num_graphs):
    n = x.shape[0]
    src, dst = edge_index[0], edge_index[1]
    adj = jnp.zeros((n, n), jnp.float32).at[dst, src].add(1.0)
    layers = [params["conv1"]] + list(params["convs"])
    h = x.astype(jnp.float32)
    for p in layers:
        agg = _bdot(adj, h) + (1.0 + p["eps"]) * h
        z = jnp.maximum(_bdot(agg, p["w1"]) + p["b1"], 0.0)
        z = jnp.maximum(_bdot(z, p["w2"]) + p["b2"], 0.0)
        h = z * p["scale"] + p["shift"]
    one_hot = (batch[None, :] == jnp.arange(num_graphs)[:, None]).astype(jnp.float32)
    counts = jnp.maximum(one_hot.sum(axis=1, keepdims=True), 1.0)
    pooled = _bdot((one_hot / counts), h)
    t = jnp.maximum(_bdot(pooled, params["lin1"][0]) + params["lin1"][1], 0.0)
    logits = _bdot(t, params["lin2"][0]) + params["lin2"][1]
    return jax.nn.log_softmax(logits, axis=-1)


# ----------------------------------------------------------------------------
# Main
# ----------------------------------------------------------------------------
if __name__ == "__main__":
    NUM_NODES = 16
    NUM_FEATURES = 8
    HIDDEN = 32
    NUM_CLASSES = 4
    NUM_LAYERS = 3
    NUM_EDGES = 40
    NUM_GRAPHS = 2

    key = jax.random.PRNGKey(0)
    k_x, k_e, k_p = jax.random.split(key, 3)

    x = jax.random.normal(k_x, (NUM_NODES, NUM_FEATURES), jnp.float32)
    edge_index = jax.random.randint(k_e, (2, NUM_EDGES), 0, NUM_NODES, jnp.int32)
    # Two graphs: first 8 nodes -> graph 0, last 8 nodes -> graph 1.
    batch = jnp.concatenate([jnp.zeros((8,), jnp.int32), jnp.ones((8,), jnp.int32)])

    # bf16 adjacency requires edge multiplicities <= 256 to be exact.
    mult = jnp.zeros((NUM_NODES, NUM_NODES), jnp.float32).at[
        edge_index[1], edge_index[0]].add(1.0)
    assert float(mult.max()) <= 256.0, "edge multiplicity too large for bf16 adjacency"

    params = init_gin2_params(k_p, NUM_FEATURES, HIDDEN, NUM_CLASSES, NUM_LAYERS)

    fwd = jax.jit(functools.partial(gin2_forward, num_graphs=NUM_GRAPHS))
    out = fwd(params, x, edge_index, batch)
    out = jax.block_until_ready(out)

    assert out.shape == (NUM_GRAPHS, NUM_CLASSES)
    # log_softmax rows must sum (in prob space) to ~1
    assert jnp.allclose(jnp.exp(out).sum(axis=-1), 1.0, atol=1e-4)
    # Match pure-JAX reference of the same eval-mode, bf16-matmul forward.
    ref = gin2_reference(params, x, edge_index, batch, NUM_GRAPHS)
    assert jnp.allclose(out, ref, atol=1e-2, rtol=1e-2)
    print("KERNEL_OK")
</pallas_src>

<mosaic_0001>
module attributes {stable_mosaic.version = 11 : i64} {
  func.func @gin2_fused_kernel(%arg0: memref<3xf32, #tpu.memory_space<smem>>, %arg1: memref<16x16xbf16, #tpu.memory_space<vmem>>, %arg2: memref<16x128xf32, #tpu.memory_space<vmem>>, %arg3: memref<3x128x128xbf16, #tpu.memory_space<vmem>>, %arg4: memref<3x1x128xf32, #tpu.memory_space<vmem>>, %arg5: memref<3x128x128xbf16, #tpu.memory_space<vmem>>, %arg6: memref<3x1x128xf32, #tpu.memory_space<vmem>>, %arg7: memref<3x1x128xf32, #tpu.memory_space<vmem>>, %arg8: memref<3x1x128xf32, #tpu.memory_space<vmem>>, %arg9: memref<8x16xbf16, #tpu.memory_space<vmem>>, %arg10: memref<128x128xbf16, #tpu.memory_space<vmem>>, %arg11: memref<1x128xf32, #tpu.memory_space<vmem>>, %arg12: memref<128x128xbf16, #tpu.memory_space<vmem>>, %arg13: memref<1x128xf32, #tpu.memory_space<vmem>>, %arg14: memref<8x128xf32, #tpu.memory_space<vmem>>) attributes {dimension_semantics = [], scalar_prefetch = 0 : i64, scratch_operands = 0 : i64, tpu.core_type = #tpu.core_type<tc>} {
    %c0 = arith.constant 0 : index
    %c0_0 = arith.constant 0 : index
    %0 = vector.load %arg1[%c0, %c0_0] : memref<16x16xbf16, #tpu.memory_space<vmem>>, vector<16x16xbf16>
    %c0_1 = arith.constant 0 : index
    %c0_2 = arith.constant 0 : index
    %1 = vector.load %arg2[%c0_1, %c0_2] : memref<16x128xf32, #tpu.memory_space<vmem>>, vector<16x128xf32>
    %c0_3 = arith.constant 0 : index
    %2 = memref.load %arg0[%c0_3] : memref<3xf32, #tpu.memory_space<smem>>
    %cst = arith.constant 1.000000e+00 : f32
    %3 = arith.addf %cst, %2 : f32
    %4 = arith.truncf %1 : vector<16x128xf32> to vector<16x128xbf16>
    %cst_4 = arith.constant dense<0.000000e+00> : vector<16x128xf32>
    %5 = tpu.matmul %0, %4, %cst_4 {dimension_numbers = #tpu.dot_dimension_numbers<[1], [0], [0], [1], [0, 0, 1, 1], [], []>} : vector<16x16xbf16>, vector<16x128xbf16>, vector<16x128xf32> -> vector<16x128xf32>
    %6 = vector.broadcast %3 : f32 to vector<16x128xf32>
    %7 = arith.mulf %6, %1 : vector<16x128xf32>
    %8 = arith.addf %5, %7 : vector<16x128xf32>
    %9 = arith.truncf %8 : vector<16x128xf32> to vector<16x128xbf16>
    %c0_5 = arith.constant 0 : index
    %c0_6 = arith.constant 0 : index
    %c0_7 = arith.constant 0 : index
    %10 = vector.load %arg3[%c0_5, %c0_6, %c0_7] : memref<3x128x128xbf16, #tpu.memory_space<vmem>>, vector<1x128x128xbf16>
    %11 = vector.shape_cast %10 : vector<1x128x128xbf16> to vector<128x128xbf16>
    %cst_8 = arith.constant dense<0.000000e+00> : vector<16x128xf32>
    %12 = tpu.matmul %9, %11, %cst_8 {dimension_numbers = #tpu.dot_dimension_numbers<[1], [0], [0], [1], [0, 0, 1, 1], [], []>} : vector<16x128xbf16>, vector<128x128xbf16>, vector<16x128xf32> -> vector<16x128xf32>
    %c0_9 = arith.constant 0 : index
    %c0_10 = arith.constant 0 : index
    %c0_11 = arith.constant 0 : index
    %13 = vector.load %arg4[%c0_9, %c0_10, %c0_11] : memref<3x1x128xf32, #tpu.memory_space<vmem>>, vector<1x1x128xf32>
    %14 = vector.shape_cast %13 : vector<1x1x128xf32> to vector<1x128xf32>
    %15 = vector.broadcast %14 : vector<1x128xf32> to vector<16x128xf32>
    %16 = arith.addf %12, %15 : vector<16x128xf32>
    %cst_12 = arith.constant 0.000000e+00 : f32
    %17 = vector.broadcast %cst_12 : f32 to vector<16x128xf32>
    %18 = arith.maximumf %16, %17 : vector<16x128xf32>
    %19 = arith.truncf %18 : vector<16x128xf32> to vector<16x128xbf16>
    %c0_13 = arith.constant 0 : index
    %c0_14 = arith.constant 0 : index
    %c0_15 = arith.constant 0 : index
    %20 = vector.load %arg5[%c0_13, %c0_14, %c0_15] : memref<3x128x128xbf16, #tpu.memory_space<vmem>>, vector<1x128x128xbf16>
    %21 = vector.shape_cast %20 : vector<1x128x128xbf16> to vector<128x128xbf16>
    %cst_16 = arith.constant dense<0.000000e+00> : vector<16x128xf32>
    %22 = tpu.matmul %19, %21, %cst_16 {dimension_numbers = #tpu.dot_dimension_numbers<[1], [0], [0], [1], [0, 0, 1, 1], [], []>} : vector<16x128xbf16>, vector<128x128xbf16>, vector<16x128xf32> -> vector<16x128xf32>
    %c0_17 = arith.constant 0 : index
    %c0_18 = arith.constant 0 : index
    %c0_19 = arith.constant 0 : index
    %23 = vector.load %arg6[%c0_17, %c0_18, %c0_19] : memref<3x1x128xf32, #tpu.memory_space<vmem>>, vector<1x1x128xf32>
    %24 = vector.shape_cast %23 : vector<1x1x128xf32> to vector<1x128xf32>
    %25 = vector.broadcast %24 : vector<1x128xf32> to vector<16x128xf32>
    %26 = arith.addf %22, %25 : vector<16x128xf32>
    %cst_20 = arith.constant 0.000000e+00 : f32
    %27 = vector.broadcast %cst_20 : f32 to vector<16x128xf32>
    %28 = arith.maximumf %26, %27 : vector<16x128xf32>
    %c0_21 = arith.constant 0 : index
    %c0_22 = arith.constant 0 : index
    %c0_23 = arith.constant 0 : index
    %29 = vector.load %arg7[%c0_21, %c0_22, %c0_23] : memref<3x1x128xf32, #tpu.memory_space<vmem>>, vector<1x1x128xf32>
    %30 = vector.shape_cast %29 : vector<1x1x128xf32> to vector<1x128xf32>
    %31 = vector.broadcast %30 : vector<1x128xf32> to vector<16x128xf32>
    %32 = arith.mulf %28, %31 : vector<16x128xf32>
    %c0_24 = arith.constant 0 : index
    %c0_25 = arith.constant 0 : index
    %c0_26 = arith.constant 0 : index
    %33 = vector.load %arg8[%c0_24, %c0_25, %c0_26] : memref<3x1x128xf32, #tpu.memory_space<vmem>>, vector<1x1x128xf32>
    %34 = vector.shape_cast %33 : vector<1x1x128xf32> to vector<1x128xf32>
    %35 = vector.broadcast %34 : vector<1x128xf32> to vector<16x128xf32>
    %36 = arith.addf %32, %35 : vector<16x128xf32>
    %c1 = arith.constant 1 : index
    %37 = memref.load %arg0[%c1] : memref<3xf32, #tpu.memory_space<smem>>
    %cst_27 = arith.constant 1.000000e+00 : f32
    %38 = arith.addf %cst_27, %37 : f32
    %39 = arith.truncf %36 : vector<16x128xf32> to vector<16x128xbf16>
    %cst_28 = arith.constant dense<0.000000e+00> : vector<16x128xf32>
    %40 = tpu.matmul %0, %39, %cst_28 {dimension_numbers = #tpu.dot_dimension_numbers<[1], [0], [0], [1], [0, 0, 1, 1], [], []>} : vector<16x16xbf16>, vector<16x128xbf16>, vector<16x128xf32> -> vector<16x128xf32>
    %41 = vector.broadcast %38 : f32 to vector<16x128xf32>
    %42 = arith.mulf %41, %36 : vector<16x128xf32>
    %43 = arith.addf %40, %42 : vector<16x128xf32>
    %44 = arith.truncf %43 : vector<16x128xf32> to vector<16x128xbf16>
    %c1_29 = arith.constant 1 : index
    %c0_30 = arith.constant 0 : index
    %c0_31 = arith.constant 0 : index
    %45 = vector.load %arg3[%c1_29, %c0_30, %c0_31] : memref<3x128x128xbf16, #tpu.memory_space<vmem>>, vector<1x128x128xbf16>
    %46 = vector.shape_cast %45 : vector<1x128x128xbf16> to vector<128x128xbf16>
    %cst_32 = arith.constant dense<0.000000e+00> : vector<16x128xf32>
    %47 = tpu.matmul %44, %46, %cst_32 {dimension_numbers = #tpu.dot_dimension_numbers<[1], [0], [0], [1], [0, 0, 1, 1], [], []>} : vector<16x128xbf16>, vector<128x128xbf16>, vector<16x128xf32> -> vector<16x128xf32>
    %c1_33 = arith.constant 1 : index
    %c0_34 = arith.constant 0 : index
    %c0_35 = arith.constant 0 : index
    %48 = vector.load %arg4[%c1_33, %c0_34, %c0_35] : memref<3x1x128xf32, #tpu.memory_space<vmem>>, vector<1x1x128xf32>
    %49 = vector.shape_cast %48 : vector<1x1x128xf32> to vector<1x128xf32>
    %50 = vector.broadcast %49 : vector<1x128xf32> to vector<16x128xf32>
    %51 = arith.addf %47, %50 : vector<16x128xf32>
    %cst_36 = arith.constant 0.000000e+00 : f32
    %52 = vector.broadcast %cst_36 : f32 to vector<16x128xf32>
    %53 = arith.maximumf %51, %52 : vector<16x128xf32>
    %54 = arith.truncf %53 : vector<16x128xf32> to vector<16x128xbf16>
    %c1_37 = arith.constant 1 : index
    %c0_38 = arith.constant 0 : index
    %c0_39 = arith.constant 0 : index
    %55 = vector.load %arg5[%c1_37, %c0_38, %c0_39] : memref<3x128x128xbf16, #tpu.memory_space<vmem>>, vector<1x128x128xbf16>
    %56 = vector.shape_cast %55 : vector<1x128x128xbf16> to vector<128x128xbf16>
    %cst_40 = arith.constant dense<0.000000e+00> : vector<16x128xf32>
    %57 = tpu.matmul %54, %56, %cst_40 {dimension_numbers = #tpu.dot_dimension_numbers<[1], [0], [0], [1], [0, 0, 1, 1], [], []>} : vector<16x128xbf16>, vector<128x128xbf16>, vector<16x128xf32> -> vector<16x128xf32>
    %c1_41 = arith.constant 1 : index
    %c0_42 = arith.constant 0 : index
    %c0_43 = arith.constant 0 : index
    %58 = vector.load %arg6[%c1_41, %c0_42, %c0_43] : memref<3x1x128xf32, #tpu.memory_space<vmem>>, vector<1x1x128xf32>
    %59 = vector.shape_cast %58 : vector<1x1x128xf32> to vector<1x128xf32>
    %60 = vector.broadcast %59 : vector<1x128xf32> to vector<16x128xf32>
    %61 = arith.addf %57, %60 : vector<16x128xf32>
    %cst_44 = arith.constant 0.000000e+00 : f32
    %62 = vector.broadcast %cst_44 : f32 to vector<16x128xf32>
    %63 = arith.maximumf %61, %62 : vector<16x128xf32>
    %c1_45 = arith.constant 1 : index
    %c0_46 = arith.constant 0 : index
    %c0_47 = arith.constant 0 : index
    %64 = vector.load %arg7[%c1_45, %c0_46, %c0_47] : memref<3x1x128xf32, #tpu.memory_space<vmem>>, vector<1x1x128xf32>
    %65 = vector.shape_cast %64 : vector<1x1x128xf32> to vector<1x128xf32>
    %66 = vector.broadcast %65 : vector<1x128xf32> to vector<16x128xf32>
    %67 = arith.mulf %63, %66 : vector<16x128xf32>
    %c1_48 = arith.constant 1 : index
    %c0_49 = arith.constant 0 : index
    %c0_50 = arith.constant 0 : index
    %68 = vector.load %arg8[%c1_48, %c0_49, %c0_50] : memref<3x1x128xf32, #tpu.memory_space<vmem>>, vector<1x1x128xf32>
    %69 = vector.shape_cast %68 : vector<1x1x128xf32> to vector<1x128xf32>
    %70 = vector.broadcast %69 : vector<1x128xf32> to vector<16x128xf32>
    %71 = arith.addf %67, %70 : vector<16x128xf32>
    %c2 = arith.constant 2 : index
    %72 = memref.load %arg0[%c2] : memref<3xf32, #tpu.memory_space<smem>>
    %cst_51 = arith.constant 1.000000e+00 : f32
    %73 = arith.addf %cst_51, %72 : f32
    %74 = arith.truncf %71 : vector<16x128xf32> to vector<16x128xbf16>
    %cst_52 = arith.constant dense<0.000000e+00> : vector<16x128xf32>
    %75 = tpu.matmul %0, %74, %cst_52 {dimension_numbers = #tpu.dot_dimension_numbers<[1], [0], [0], [1], [0, 0, 1, 1], [], []>} : vector<16x16xbf16>, vector<16x128xbf16>, vector<16x128xf32> -> vector<16x128xf32>
    %76 = vector.broadcast %73 : f32 to vector<16x128xf32>
    %77 = arith.mulf %76, %71 : vector<16x128xf32>
    %78 = arith.addf %75, %77 : vector<16x128xf32>
    %79 = arith.truncf %78 : vector<16x128xf32> to vector<16x128xbf16>
    %c2_53 = arith.constant 2 : index
    %c0_54 = arith.constant 0 : index
    %c0_55 = arith.constant 0 : index
    %80 = vector.load %arg3[%c2_53, %c0_54, %c0_55] : memref<3x128x128xbf16, #tpu.memory_space<vmem>>, vector<1x128x128xbf16>
    %81 = vector.shape_cast %80 : vector<1x128x128xbf16> to vector<128x128xbf16>
    %cst_56 = arith.constant dense<0.000000e+00> : vector<16x128xf32>
    %82 = tpu.matmul %79, %81, %cst_56 {dimension_numbers = #tpu.dot_dimension_numbers<[1], [0], [0], [1], [0, 0, 1, 1], [], []>} : vector<16x128xbf16>, vector<128x128xbf16>, vector<16x128xf32> -> vector<16x128xf32>
    %c2_57 = arith.constant 2 : index
    %c0_58 = arith.constant 0 : index
    %c0_59 = arith.constant 0 : index
    %83 = vector.load %arg4[%c2_57, %c0_58, %c0_59] : memref<3x1x128xf32, #tpu.memory_space<vmem>>, vector<1x1x128xf32>
    %84 = vector.shape_cast %83 : vector<1x1x128xf32> to vector<1x128xf32>
    %85 = vector.broadcast %84 : vector<1x128xf32> to vector<16x128xf32>
    %86 = arith.addf %82, %85 : vector<16x128xf32>
    %cst_60 = arith.constant 0.000000e+00 : f32
    %87 = vector.broadcast %cst_60 : f32 to vector<16x128xf32>
    %88 = arith.maximumf %86, %87 : vector<16x128xf32>
    %89 = arith.truncf %88 : vector<16x128xf32> to vector<16x128xbf16>
    %c2_61 = arith.constant 2 : index
    %c0_62 = arith.constant 0 : index
    %c0_63 = arith.constant 0 : index
    %90 = vector.load %arg5[%c2_61, %c0_62, %c0_63] : memref<3x128x128xbf16, #tpu.memory_space<vmem>>, vector<1x128x128xbf16>
    %91 = vector.shape_cast %90 : vector<1x128x128xbf16> to vector<128x128xbf16>
    %cst_64 = arith.constant dense<0.000000e+00> : vector<16x128xf32>
    %92 = tpu.matmul %89, %91, %cst_64 {dimension_numbers = #tpu.dot_dimension_numbers<[1], [0], [0], [1], [0, 0, 1, 1], [], []>} : vector<16x128xbf16>, vector<128x128xbf16>, vector<16x128xf32> -> vector<16x128xf32>
    %c2_65 = arith.constant 2 : index
    %c0_66 = arith.constant 0 : index
    %c0_67 = arith.constant 0 : index
    %93 = vector.load %arg6[%c2_65, %c0_66, %c0_67] : memref<3x1x128xf32, #tpu.memory_space<vmem>>, vector<1x1x128xf32>
    %94 = vector.shape_cast %93 : vector<1x1x128xf32> to vector<1x128xf32>
    %95 = vector.broadcast %94 : vector<1x128xf32> to vector<16x128xf32>
    %96 = arith.addf %92, %95 : vector<16x128xf32>
    %cst_68 = arith.constant 0.000000e+00 : f32
    %97 = vector.broadcast %cst_68 : f32 to vector<16x128xf32>
    %98 = arith.maximumf %96, %97 : vector<16x128xf32>
    %c2_69 = arith.constant 2 : index
    %c0_70 = arith.constant 0 : index
    %c0_71 = arith.constant 0 : index
    %99 = vector.load %arg7[%c2_69, %c0_70, %c0_71] : memref<3x1x128xf32, #tpu.memory_space<vmem>>, vector<1x1x128xf32>
    %100 = vector.shape_cast %99 : vector<1x1x128xf32> to vector<1x128xf32>
    %101 = vector.broadcast %100 : vector<1x128xf32> to vector<16x128xf32>
    %102 = arith.mulf %98, %101 : vector<16x128xf32>
    %c2_72 = arith.constant 2 : index
    %c0_73 = arith.constant 0 : index
    %c0_74 = arith.constant 0 : index
    %103 = vector.load %arg8[%c2_72, %c0_73, %c0_74] : memref<3x1x128xf32, #tpu.memory_space<vmem>>, vector<1x1x128xf32>
    %104 = vector.shape_cast %103 : vector<1x1x128xf32> to vector<1x128xf32>
    %105 = vector.broadcast %104 : vector<1x128xf32> to vector<16x128xf32>
    %106 = arith.addf %102, %105 : vector<16x128xf32>
    %c0_75 = arith.constant 0 : index
    %c0_76 = arith.constant 0 : index
    %107 = vector.load %arg9[%c0_75, %c0_76] : memref<8x16xbf16, #tpu.memory_space<vmem>>, vector<8x16xbf16>
    %108 = arith.truncf %106 : vector<16x128xf32> to vector<16x128xbf16>
    %cst_77 = arith.constant dense<0.000000e+00> : vector<8x128xf32>
    %109 = tpu.matmul %107, %108, %cst_77 {dimension_numbers = #tpu.dot_dimension_numbers<[1], [0], [0], [1], [0, 0, 1, 1], [], []>} : vector<8x16xbf16>, vector<16x128xbf16>, vector<8x128xf32> -> vector<8x128xf32>
    %110 = arith.truncf %109 : vector<8x128xf32> to vector<8x128xbf16>
    %c0_78 = arith.constant 0 : index
    %c0_79 = arith.constant 0 : index
    %111 = vector.load %arg10[%c0_78, %c0_79] : memref<128x128xbf16, #tpu.memory_space<vmem>>, vector<128x128xbf16>
    %cst_80 = arith.constant dense<0.000000e+00> : vector<8x128xf32>
    %112 = tpu.matmul %110, %111, %cst_80 {dimension_numbers = #tpu.dot_dimension_numbers<[1], [0], [0], [1], [0, 0, 1, 1], [], []>} : vector<8x128xbf16>, vector<128x128xbf16>, vector<8x128xf32> -> vector<8x128xf32>
    %c0_81 = arith.constant 0 : index
    %c0_82 = arith.constant 0 : index
    %113 = vector.load %arg11[%c0_81, %c0_82] : memref<1x128xf32, #tpu.memory_space<vmem>>, vector<1x128xf32>
    %114 = vector.broadcast %113 : vector<1x128xf32> to vector<8x128xf32>
    %115 = arith.addf %112, %114 : vector<8x128xf32>
    %cst_83 = arith.constant 0.000000e+00 : f32
    %116 = vector.broadcast %cst_83 : f32 to vector<8x128xf32>
    %117 = arith.maximumf %115, %116 : vector<8x128xf32>
    %118 = arith.truncf %117 : vector<8x128xf32> to vector<8x128xbf16>
    %c0_84 = arith.constant 0 : index
    %c0_85 = arith.constant 0 : index
    %119 = vector.load %arg12[%c0_84, %c0_85] : memref<128x128xbf16, #tpu.memory_space<vmem>>, vector<128x128xbf16>
    %cst_86 = arith.constant dense<0.000000e+00> : vector<8x128xf32>
    %120 = tpu.matmul %118, %119, %cst_86 {dimension_numbers = #tpu.dot_dimension_numbers<[1], [0], [0], [1], [0, 0, 1, 1], [], []>} : vector<8x128xbf16>, vector<128x128xbf16>, vector<8x128xf32> -> vector<8x128xf32>
    %c0_87 = arith.constant 0 : index
    %c0_88 = arith.constant 0 : index
    %121 = vector.load %arg13[%c0_87, %c0_88] : memref<1x128xf32, #tpu.memory_space<vmem>>, vector<1x128xf32>
    %122 = vector.broadcast %121 : vector<1x128xf32> to vector<8x128xf32>
    %123 = arith.addf %120, %122 : vector<8x128xf32>
    %124 = tpu.iota {dimensions = array<i32: 1>} : vector<8x128xi32>
    %c4_i32 = arith.constant 4 : i32
    %125 = vector.broadcast %c4_i32 : i32 to vector<8x128xi32>
    %126 = arith.cmpi slt, %124, %125 : vector<8x128xi32>
    %cst_89 = arith.constant -1.000000e+30 : f32
    %127 = vector.broadcast %cst_89 : f32 to vector<8x128xf32>
    %128 = arith.select %126, %123, %127 : vector<8x128xi1>, vector<8x128xf32>
    %cst_90 = arith.constant dense<0xFF800000> : vector<8xf32>
    %129 = vector.multi_reduction <maximumf>, %128, %cst_90 [1] : vector<8x128xf32> to vector<8xf32>
    %130 = vector.shape_cast %129 : vector<8xf32> to vector<8x1xf32>
    %131 = vector.broadcast %130 : vector<8x1xf32> to vector<8x128xf32>
    %132 = arith.subf %128, %131 : vector<8x128xf32>
    %133 = math.exp %132 : vector<8x128xf32>
    %cst_91 = arith.constant dense<0.000000e+00> : vector<8xf32>
    %134 = vector.multi_reduction <add>, %133, %cst_91 [1] : vector<8x128xf32> to vector<8xf32>
    %135 = vector.shape_cast %134 : vector<8xf32> to vector<8x1xf32>
    %136 = math.log %135 : vector<8x1xf32>
    %137 = vector.broadcast %136 : vector<8x1xf32> to vector<8x128xf32>
    %138 = arith.subf %132, %137 : vector<8x128xf32>
    %c0_92 = arith.constant 0 : index
    %c0_93 = arith.constant 0 : index
    %139 = vector.load %arg14[%c0_92, %c0_93] : memref<8x128xf32, #tpu.memory_space<vmem>>, vector<8x128xf32>
    tpu.vector_store %arg14[%c0_92, %c0_93], %138 {strides = array<i32>} : memref<8x128xf32, #tpu.memory_space<vmem>>, vector<8x128xf32>,
    return
  }
}

</mosaic_0001>

<llo_original>
// kernel: gin2_forward.1
$region0: #{gin2_forward.1}
  #allocation0 [shape = 'u32[]', space=smem, size = 0x4, offset = 0x4, fixed_abs, tag = 'smem constant byte address 0x4 - core index']
  #allocation1 [shape = 'u32[144,128]{1,0:T(1,128)}', space=vmem, size = 0x12000, scoped, tag = 'internal scratch']
  %s0 = inlined_call_operand.vmem [shape: f32[3], index: 0, kind: input, shape index: {}]
  %s1 = inlined_call_operand.vmem [shape: bf16[16,16], index: 1, kind: input, shape index: {}]
  %s2 = inlined_call_operand.vmem [shape: f32[16,128], index: 2, kind: input, shape index: {}]
  %s3 = inlined_call_operand.vmem [shape: bf16[3,128,128], index: 3, kind: input, shape index: {}]
  %s4 = inlined_call_operand.vmem [shape: f32[3,1,128], index: 4, kind: input, shape index: {}]
  %s5 = inlined_call_operand.vmem [shape: bf16[3,128,128], index: 5, kind: input, shape index: {}]
  %s6 = inlined_call_operand.vmem [shape: f32[3,1,128], index: 6, kind: input, shape index: {}]
  %s7 = inlined_call_operand.vmem [shape: f32[3,1,128], index: 7, kind: input, shape index: {}]
  %s8 = inlined_call_operand.vmem [shape: f32[3,1,128], index: 8, kind: input, shape index: {}]
  %s9 = inlined_call_operand.vmem [shape: bf16[8,16], index: 9, kind: input, shape index: {}]
  %s10 = inlined_call_operand.vmem [shape: bf16[128,128], index: 10, kind: input, shape index: {}]
  %s11 = inlined_call_operand.vmem [shape: f32[1,128], index: 11, kind: input, shape index: {}]
  %s12 = inlined_call_operand.vmem [shape: bf16[128,128], index: 12, kind: input, shape index: {}]
  %s13 = inlined_call_operand.vmem [shape: f32[1,128], index: 13, kind: input, shape index: {}]
  %s14 = inlined_call_operand.vmem [shape: f32[8,128], index: 14, kind: output, shape index: {}]
  %s15 = sld [smem:[#allocation0]]
  $region70: #{gin2_forward.1} parent=0
    _
  %s17 = ssub.s32 1, %s15
  %s18 = scalar_select 0, %s17, %s15
  $region1: #{gin2_forward.1} parent=0
    #allocation2 [shape = 'u8[512]{0}', space=smem, size = 0x200, scoped, tag = 'input window, operand 0, single buffered']
    #allocation3 [shape = 's32[1]{0}', space=sflag, size = 0x4, scoped, tag = 'scoped memory for gin2_forward.1']
    %19 = vsyncpa [#allocation3], 0
    // Predicated region
    $region2: #{gin2_forward.1} parent=1 // pred_check
      _
    $region3: #{gin2_forward.1} parent=1 // pred_check_branch
      %21 = sbr.rel (0) target = $region5
    $region4: #{gin2_forward.1} parent=1 // pred_region
      %s23 = ssub.s32 16, 16
      %24 = vsyncadd [#allocation3], %s23
      %s26 = sshll.u32 %s0, 4
      %s27 = int_to_ptr.vmem [resolvable:$true] %s26
      %29 = dma.vmem_to_smem %s27, 16, [#allocation2], [#allocation3]
    $region5: #{gin2_forward.1} parent=1 // pred_fallthru
      _
    // Predicated region
    $region6: #{gin2_forward.1} parent=1 // pred_check
      _
    $region7: #{gin2_forward.1} parent=1 // pred_check_branch
      %31 = sbr.rel (0) target = $region9
    $region8: #{gin2_forward.1} parent=1 // pred_region
      _
    $region9: #{gin2_forward.1} parent=1 // pred_fallthru
      _
    // Predicated region
    $region10: #{gin2_forward.1} parent=1 // pred_check
      _
    $region11: #{gin2_forward.1} parent=1 // pred_check_branch
      %33 = sbr.rel (0) target = $region13
    $region12: #{gin2_forward.1} parent=1 // pred_region
      _
    $region13: #{gin2_forward.1} parent=1 // pred_fallthru
      _
    // Predicated region
    $region14: #{gin2_forward.1} parent=1 // pred_check
      _
    $region15: #{gin2_forward.1} parent=1 // pred_check_branch
      %35 = sbr.rel (0) target = $region17
    $region16: #{gin2_forward.1} parent=1 // pred_region
      _
    $region17: #{gin2_forward.1} parent=1 // pred_fallthru
      _
    // Predicated region
    $region18: #{gin2_forward.1} parent=1 // pred_check
      _
    $region19: #{gin2_forward.1} parent=1 // pred_check_branch
      %37 = sbr.rel (0) target = $region21
    $region20: #{gin2_forward.1} parent=1 // pred_region
      _
    $region21: #{gin2_forward.1} parent=1 // pred_fallthru
      _
    // Predicated region
    $region22: #{gin2_forward.1} parent=1 // pred_check
      _
    $region23: #{gin2_forward.1} parent=1 // pred_check_branch
      %39 = sbr.rel (0) target = $region25
    $region24: #{gin2_forward.1} parent=1 // pred_region
      _
    $region25: #{gin2_forward.1} parent=1 // pred_fallthru
      _
    // Predicated region
    $region26: #{gin2_forward.1} parent=1 // pred_check
      _
    $region27: #{gin2_forward.1} parent=1 // pred_check_branch
      %41 = sbr.rel (0) target = $region29
    $region28: #{gin2_forward.1} parent=1 // pred_region
      _
    $region29: #{gin2_forward.1} parent=1 // pred_fallthru
      _
    // Predicated region
    $region30: #{gin2_forward.1} parent=1 // pred_check
      _
    $region31: #{gin2_forward.1} parent=1 // pred_check_branch
      %43 = sbr.rel (0) target = $region33
    $region32: #{gin2_forward.1} parent=1 // pred_region
      _
    $region33: #{gin2_forward.1} parent=1 // pred_fallthru
      _
    // Predicated region
    $region34: #{gin2_forward.1} parent=1 // pred_check
      _
    $region35: #{gin2_forward.1} parent=1 // pred_check_branch
      %45 = sbr.rel (0) target = $region37
    $region36: #{gin2_forward.1} parent=1 // pred_region
      _
    $region37: #{gin2_forward.1} parent=1 // pred_fallthru
      _
    // Predicated region
    $region38: #{gin2_forward.1} parent=1 // pred_check
      _
    $region39: #{gin2_forward.1} parent=1 // pred_check_branch
      %47 = sbr.rel (0) target = $region41
    $region40: #{gin2_forward.1} parent=1 // pred_region
      _
    $region41: #{gin2_forward.1} parent=1 // pred_fallthru
      _
    // Predicated region
    $region42: #{gin2_forward.1} parent=1 // pred_check
      _
    $region43: #{gin2_forward.1} parent=1 // pred_check_branch
      %49 = sbr.rel (0) target = $region45
    $region44: #{gin2_forward.1} parent=1 // pred_region
      _
    $region45: #{gin2_forward.1} parent=1 // pred_fallthru
      _
    // Predicated region
    $region46: #{gin2_forward.1} parent=1 // pred_check
      _
    $region47: #{gin2_forward.1} parent=1 // pred_check_branch
      %51 = sbr.rel (0) target = $region49
    $region48: #{gin2_forward.1} parent=1 // pred_region
      _
    $region49: #{gin2_forward.1} parent=1 // pred_fallthru
      _
    // Predicated region
    $region50: #{gin2_forward.1} parent=1 // pred_check
      _
    $region51: #{gin2_forward.1} parent=1 // pred_check_branch
      %53 = sbr.rel (0) target = $region53
    $region52: #{gin2_forward.1} parent=1 // pred_region
      _
    $region53: #{gin2_forward.1} parent=1 // pred_fallthru
      _
    // Predicated region
    $region54: #{gin2_forward.1} parent=1 // pred_check
      _
    $region55: #{gin2_forward.1} parent=1 // pred_check_branch
      %55 = sbr.rel (0) target = $region57
    $region56: #{gin2_forward.1} parent=1 // pred_region
      _
    $region57: #{gin2_forward.1} parent=1 // pred_fallthru
      _
    // Predicated region
    $region58: #{gin2_forward.1} parent=1 // pred_check
      _
    $region59: #{gin2_forward.1} parent=1 // pred_check_branch
      %57 = sbr.rel (0) target = $region61
    $region60: #{gin2_forward.1} parent=1 // pred_region
      %58 = dma.done [#allocation3], 16
    $region61: #{gin2_forward.1} parent=1 // pred_fallthru
      _
    %59 = sfence
    %v61 = vld [vmem:[%s1] sm:$0xf]
    %v62 = vld [vmem:[%s1 + $0x4] sm:$0xf]
    %v63 = vld [vmem:[%s2] sm:$0xff]
    %v64 = vld [vmem:[%s2 + $0x8] sm:$0xff]
    %s65 = sld [smem:[#allocation2]]
    %s66 = sadd.f32 %s65, 1.0
    %v67 = vpack.c.bf16 %v64, %v63
    %v68 = vstv %s66
    %v69 = vmul.f32 %v68, %v63
    %v70 = vmul.f32 %v68, %v64
    %v73 = vunpack.c.l.b16 %v61
    %v74 = vunpack.c.l.b16 %v62
    %v75 = vpack.c.b16 %v74, %v73
    %vm76 = vcmask 130048
    %v78 = vsel %vm76, %v75, 0
    %80 = vmatprep.subr.bf16.mxu0 0
    %81 = vmatpush1.bf16.msra.mxu0 %v67
    %82 = vmatprep.subr.bf16.mxu0 0
    %83 = vmatpush1.bf16.msra.mxu0 0
    %84 = vmatprep.subr.bf16.mxu0 0
    %85 = vmatpush1.bf16.msra.mxu0 0
    %86 = vmatprep.subr.bf16.mxu0 0
    %87 = vmatpush1.bf16.msra.mxu0 0
    %88 = vmatprep.subr.bf16.mxu0 0
    %89 = vmatpush1.bf16.msra.mxu0 0
    %90 = vmatprep.subr.bf16.mxu0 0
    %91 = vmatpush1.bf16.msra.mxu0 0
    %92 = vmatprep.subr.bf16.mxu0 0
    %93 = vmatpush1.bf16.msra.mxu0 0
    %94 = vmatprep.subr.bf16.mxu0 0
    %95 = vmatpush1.bf16.msra.mxu0 0
    %96 = vmatprep.subr.bf16.mxu0 0
    %97 = vmatpush1.bf16.msra.mxu0 0
    %98 = vmatprep.subr.bf16.mxu0 0
    %99 = vmatpush1.bf16.msra.mxu0 0
    %100 = vmatprep.subr.bf16.mxu0 0
    %101 = vmatpush1.bf16.msra.mxu0 0
    %102 = vmatprep.subr.bf16.mxu0 0
    %103 = vmatpush1.bf16.msra.mxu0 0
    %104 = vmatprep.subr.bf16.mxu0 0
    %105 = vmatpush1.bf16.msra.mxu0 0
    %106 = vmatprep.subr.bf16.mxu0 0
    %107 = vmatpush1.bf16.msra.mxu0 0
    %108 = vmatprep.subr.bf16.mxu0 0
    %109 = vmatpush1.bf16.msra.mxu0 0
    %110 = vmatprep.subr.bf16.mxu0 0
    %111 = vmatpush1.bf16.msra.mxu0 0
    %112 = vmatprep.mubr.bf16.mxu0 0
    %113 = vmatmul.mubr.bf16.gmra.mrb[0].mxu0 %v78
    %v114 = vpop.f32.mrb[0].mxu0
    %v115 = vadd.f32 %v69, %v114
    %v116 = vpop.f32.mrb[0].mxu0
    %v117 = vpop.f32.mrb[0].mxu0
    %v118 = vadd.f32 %v70, %v117
    %v119 = vpop.f32.mrb[0].mxu0
    %120 = vdwg.mxu0
    %v121 = vpack.c.bf16 %v118, %v115
    %v122 = vld [vmem:[%s3] sm:$0xf]
    %v123 = vld [vmem:[%s3 + $0x4] sm:$0xf]
    %v124 = vld [vmem:[%s3 + $0x8] sm:$0xf]
    %v125 = vld [vmem:[%s3 + $0xc] sm:$0xf]
    %v126 = vld [vmem:[%s3 + $0x10] sm:$0xf]
    %v127 = vld [vmem:[%s3 + $0x14] sm:$0xf]
    %v128 = vld [vmem:[%s3 + $0x18] sm:$0xf]
    %v129 = vld [vmem:[%s3 + $0x1c] sm:$0xf]
    %v130 = vld [vmem:[%s3 + $0x20] sm:$0xf]
    %v131 = vld [vmem:[%s3 + $0x24] sm:$0xf]
    %v132 = vld [vmem:[%s3 + $0x28] sm:$0xf]
    %v133 = vld [vmem:[%s3 + $0x2c] sm:$0xf]
    %v134 = vld [vmem:[%s3 + $0x30] sm:$0xf]
    %v135 = vld [vmem:[%s3 + $0x34] sm:$0xf]
    %v136 = vld [vmem:[%s3 + $0x38] sm:$0xf]
    %v137 = vld [vmem:[%s3 + $0x3c] sm:$0xf]
    %v138 = vld [vmem:[%s4] sm:$0x1]
    %v140 = vlaneseq
    %v141 = vshrl.u32 %v140, 7
    %v142 = vsub.s32 0, %v141
    %v143 = vrot.slane %v138, %v142
    %v161 = vunpack.c.l.b16 %v122
    %v162 = vunpack.c.l.b16 %v123
    %v163 = vunpack.c.l.b16 %v124
    %v164 = vunpack.c.l.b16 %v125
    %v165 = vunpack.c.l.b16 %v126
    %v166 = vunpack.c.l.b16 %v127
    %v167 = vunpack.c.l.b16 %v128
    %v168 = vunpack.c.l.b16 %v129
    %v169 = vunpack.c.l.b16 %v130
    %v170 = vunpack.c.l.b16 %v131
    %v171 = vunpack.c.l.b16 %v132
    %v172 = vunpack.c.l.b16 %v133
    %v173 = vunpack.c.l.b16 %v134
    %v174 = vunpack.c.l.b16 %v135
    %v175 = vunpack.c.l.b16 %v136
    %v176 = vunpack.c.l.b16 %v137
    %v177 = vpack.c.b16 %v162, %v161
    %v178 = vpack.c.b16 %v164, %v163
    %v179 = vpack.c.b16 %v166, %v165
    %v180 = vpack.c.b16 %v168, %v167
    %v181 = vpack.c.b16 %v170, %v169
    %v182 = vpack.c.b16 %v172, %v171
    %v183 = vpack.c.b16 %v174, %v173
    %v184 = vpack.c.b16 %v176, %v175
    %193 = vmatprep.subr.bf16.mxu0 0
    %194 = vmatpush1.bf16.msra.mxu0 %v177
    %195 = vmatprep.subr.bf16.mxu0 0
    %196 = vmatpush1.bf16.msra.mxu0 %v178
    %197 = vmatprep.subr.bf16.mxu0 0
    %198 = vmatpush1.bf16.msra.mxu0 %v179
    %199 = vmatprep.subr.bf16.mxu0 0
    %200 = vmatpush1.bf16.msra.mxu0 %v180
    %201 = vmatprep.subr.bf16.mxu0 0
    %202 = vmatpush1.bf16.msra.mxu0 %v181
    %203 = vmatprep.subr.bf16.mxu0 0
    %204 = vmatpush1.bf16.msra.mxu0 %v182
    %205 = vmatprep.subr.bf16.mxu0 0
    %206 = vmatpush1.bf16.msra.mxu0 %v183
    %207 = vmatprep.subr.bf16.mxu0 0
    %208 = vmatpush1.bf16.msra.mxu0 %v184
    %209 = vmatprep.subr.bf16.mxu0 0
    %210 = vmatpush1.bf16.msra.mxu0 0
    %211 = vmatprep.subr.bf16.mxu0 0
    %212 = vmatpush1.bf16.msra.mxu0 0
    %213 = vmatprep.subr.bf16.mxu0 0
    %214 = vmatpush1.bf16.msra.mxu0 0
    %215 = vmatprep.subr.bf16.mxu0 0
    %216 = vmatpush1.bf16.msra.mxu0 0
    %217 = vmatprep.subr.bf16.mxu0 0
    %218 = vmatpush1.bf16.msra.mxu0 0
    %219 = vmatprep.subr.bf16.mxu0 0
    %220 = vmatpush1.bf16.msra.mxu0 0
    %221 = vmatprep.subr.bf16.mxu0 0
    %222 = vmatpush1.bf16.msra.mxu0 0
    %223 = vmatprep.subr.bf16.mxu0 0
    %224 = vmatpush1.bf16.msra.mxu0 0
    %225 = vmatprep.mubr.bf16.mxu0 0
    %226 = vmatmul.mubr.bf16.gmra.mrb[0].mxu0 %v121
    %v227 = vpop.f32.mrb[0].mxu0
    %v228 = vadd.f32 %v143, %v227
    %v229 = vpop.f32.mrb[0].mxu0
    %v230 = vpop.f32.mrb[0].mxu0
    %v231 = vadd.f32 %v143, %v230
    %v232 = vpop.f32.mrb[0].mxu0
    %233 = vdwg.mxu0
    %v234 = vmax.f32 %v228, 0.0
    %v235 = vmax.f32 %v231, 0.0
    %v236 = vpack.c.bf16 %v235, %v234
    %v237 = vld [vmem:[%s5] sm:$0xf]
    %v238 = vld [vmem:[%s5 + $0x4] sm:$0xf]
    %v239 = vld [vmem:[%s5 + $0x8] sm:$0xf]
    %v240 = vld [vmem:[%s5 + $0xc] sm:$0xf]
    %v241 = vld [vmem:[%s5 + $0x10] sm:$0xf]
    %v242 = vld [vmem:[%s5 + $0x14] sm:$0xf]
    %v243 = vld [vmem:[%s5 + $0x18] sm:$0xf]
    %v244 = vld [vmem:[%s5 + $0x1c] sm:$0xf]
    %v245 = vld [vmem:[%s5 + $0x20] sm:$0xf]
    %v246 = vld [vmem:[%s5 + $0x24] sm:$0xf]
    %v247 = vld [vmem:[%s5 + $0x28] sm:$0xf]
    %v248 = vld [vmem:[%s5 + $0x2c] sm:$0xf]
    %v249 = vld [vmem:[%s5 + $0x30] sm:$0xf]
    %v250 = vld [vmem:[%s5 + $0x34] sm:$0xf]
    %v251 = vld [vmem:[%s5 + $0x38] sm:$0xf]
    %v252 = vld [vmem:[%s5 + $0x3c] sm:$0xf]
    %v253 = vld [vmem:[%s6] sm:$0x1]
    %v255 = vlaneseq
    %v256 = vshrl.u32 %v255, 7
    %v257 = vsub.s32 0, %v256
    %v258 = vrot.slane %v253, %v257
    %v276 = vunpack.c.l.b16 %v237
    %v277 = vunpack.c.l.b16 %v238
    %v278 = vunpack.c.l.b16 %v239
    %v279 = vunpack.c.l.b16 %v240
    %v280 = vunpack.c.l.b16 %v241
    %v281 = vunpack.c.l.b16 %v242
    %v282 = vunpack.c.l.b16 %v243
    %v283 = vunpack.c.l.b16 %v244
    %v284 = vunpack.c.l.b16 %v245
    %v285 = vunpack.c.l.b16 %v246
    %v286 = vunpack.c.l.b16 %v247
    %v287 = vunpack.c.l.b16 %v248
    %v288 = vunpack.c.l.b16 %v249
    %v289 = vunpack.c.l.b16 %v250
    %v290 = vunpack.c.l.b16 %v251
    %v291 = vunpack.c.l.b16 %v252
    %v292 = vpack.c.b16 %v277, %v276
    %v293 = vpack.c.b16 %v279, %v278
    %v294 = vpack.c.b16 %v281, %v280
    %v295 = vpack.c.b16 %v283, %v282
    %v296 = vpack.c.b16 %v285, %v284
    %v297 = vpack.c.b16 %v287, %v286
    %v298 = vpack.c.b16 %v289, %v288
    %v299 = vpack.c.b16 %v291, %v290
    %308 = vmatprep.subr.bf16.mxu0 0
    %309 = vmatpush1.bf16.msra.mxu0 %v292
    %310 = vmatprep.subr.bf16.mxu0 0
    %311 = vmatpush1.bf16.msra.mxu0 %v293
    %312 = vmatprep.subr.bf16.mxu0 0
    %313 = vmatpush1.bf16.msra.mxu0 %v294
    %314 = vmatprep.subr.bf16.mxu0 0
    %315 = vmatpush1.bf16.msra.mxu0 %v295
    %316 = vmatprep.subr.bf16.mxu0 0
    %317 = vmatpush1.bf16.msra.mxu0 %v296
    %318 = vmatprep.subr.bf16.mxu0 0
    %319 = vmatpush1.bf16.msra.mxu0 %v297
    %320 = vmatprep.subr.bf16.mxu0 0
    %321 = vmatpush1.bf16.msra.mxu0 %v298
    %322 = vmatprep.subr.bf16.mxu0 0
    %323 = vmatpush1.bf16.msra.mxu0 %v299
    %324 = vmatprep.subr.bf16.mxu0 0
    %325 = vmatpush1.bf16.msra.mxu0 0
    %326 = vmatprep.subr.bf16.mxu0 0
    %327 = vmatpush1.bf16.msra.mxu0 0
    %328 = vmatprep.subr.bf16.mxu0 0
    %329 = vmatpush1.bf16.msra.mxu0 0
    %330 = vmatprep.subr.bf16.mxu0 0
    %331 = vmatpush1.bf16.msra.mxu0 0
    %332 = vmatprep.subr.bf16.mxu0 0
    %333 = vmatpush1.bf16.msra.mxu0 0
    %334 = vmatprep.subr.bf16.mxu0 0
    %335 = vmatpush1.bf16.msra.mxu0 0
    %336 = vmatprep.subr.bf16.mxu0 0
    %337 = vmatpush1.bf16.msra.mxu0 0
    %338 = vmatprep.subr.bf16.mxu0 0
    %339 = vmatpush1.bf16.msra.mxu0 0
    %340 = vmatprep.mubr.bf16.mxu0 0
    %341 = vmatmul.mubr.bf16.gmra.mrb[0].mxu0 %v236
    %v342 = vpop.f32.mrb[0].mxu0
    %v343 = vadd.f32 %v258, %v342
    %v344 = vpop.f32.mrb[0].mxu0
    %v345 = vpop.f32.mrb[0].mxu0
    %v346 = vadd.f32 %v258, %v345
    %v347 = vpop.f32.mrb[0].mxu0
    %348 = vdwg.mxu0
    %v349 = vmax.f32 %v343, 0.0
    %v350 = vmax.f32 %v346, 0.0
    %v351 = vld [vmem:[%s7] sm:$0x1]
    %v353 = vlaneseq
    %v354 = vshrl.u32 %v353, 7
    %v355 = vsub.s32 0, %v354
    %v356 = vrot.slane %v351, %v355
    %v358 = vmul.f32 %v349, %v356
    %v359 = vmul.f32 %v350, %v356
    %v360 = vld [vmem:[%s8] sm:$0x1]
    %v362 = vlaneseq
    %v363 = vshrl.u32 %v362, 7
    %v364 = vsub.s32 0, %v363
    %v365 = vrot.slane %v360, %v364
    %v367 = vadd.f32 %v358, %v365
    %v368 = vadd.f32 %v359, %v365
    %s369 = sld [smem:[#allocation2 + $0x1]]
    %s370 = sadd.f32 %s369, 1.0
    %v371 = vpack.c.bf16 %v368, %v367
    %v372 = vstv %s370
    %v373 = vmul.f32 %v372, %v367
    %v374 = vmul.f32 %v372, %v368
    %375 = vmatprep.subr.bf16.mxu0 0
    %376 = vmatpush1.bf16.msra.mxu0 %v371
    %377 = vmatprep.subr.bf16.mxu0 0
    %378 = vmatpush1.bf16.msra.mxu0 0
    %379 = vmatprep.subr.bf16.mxu0 0
    %380 = vmatpush1.bf16.msra.mxu0 0
    %381 = vmatprep.subr.bf16.mxu0 0
    %382 = vmatpush1.bf16.msra.mxu0 0
    %383 = vmatprep.subr.bf16.mxu0 0
    %384 = vmatpush1.bf16.msra.mxu0 0
    %385 = vmatprep.subr.bf16.mxu0 0
    %386 = vmatpush1.bf16.msra.mxu0 0
    %387 = vmatprep.subr.bf16.mxu0 0
    %388 = vmatpush1.bf16.msra.mxu0 0
    %389 = vmatprep.subr.bf16.mxu0 0
    %390 = vmatpush1.bf16.msra.mxu0 0
    %391 = vmatprep.subr.bf16.mxu0 0
    %392 = vmatpush1.bf16.msra.mxu0 0
    %393 = vmatprep.subr.bf16.mxu0 0
    %394 = vmatpush1.bf16.msra.mxu0 0
    %395 = vmatprep.subr.bf16.mxu0 0
    %396 = vmatpush1.bf16.msra.mxu0 0
    %397 = vmatprep.subr.bf16.mxu0 0
    %398 = vmatpush1.bf16.msra.mxu0 0
    %399 = vmatprep.subr.bf16.mxu0 0
    %400 = vmatpush1.bf16.msra.mxu0 0
    %401 = vmatprep.subr.bf16.mxu0 0
    %402 = vmatpush1.bf16.msra.mxu0 0
    %403 = vmatprep.subr.bf16.mxu0 0
    %404 = vmatpush1.bf16.msra.mxu0 0
    %405 = vmatprep.subr.bf16.mxu0 0
    %406 = vmatpush1.bf16.msra.mxu0 0
    %407 = vmatprep.mubr.bf16.mxu0 0
    %408 = vmatmul.mubr.bf16.gmra.mrb[0].mxu0 %v78
    %v409 = vpop.f32.mrb[0].mxu0
    %v410 = vadd.f32 %v373, %v409
    %v411 = vpop.f32.mrb[0].mxu0
    %v412 = vpop.f32.mrb[0].mxu0
    %v413 = vadd.f32 %v374, %v412
    %v414 = vpop.f32.mrb[0].mxu0
    %415 = vdwg.mxu0
    %v416 = vpack.c.bf16 %v413, %v410
    %s417 = scalar_lea.vmem %s3, 64
    %v418 = vld [vmem:[%s417] sm:$0xf]
    %v419 = vld [vmem:[%s417 + $0x4] sm:$0xf]
    %v420 = vld [vmem:[%s417 + $0x8] sm:$0xf]
    %v421 = vld [vmem:[%s417 + $0xc] sm:$0xf]
    %v422 = vld [vmem:[%s417 + $0x10] sm:$0xf]
    %v423 = vld [vmem:[%s417 + $0x14] sm:$0xf]
    %v424 = vld [vmem:[%s417 + $0x18] sm:$0xf]
    %v425 = vld [vmem:[%s417 + $0x1c] sm:$0xf]
    %v426 = vld [vmem:[%s417 + $0x20] sm:$0xf]
    %v427 = vld [vmem:[%s417 + $0x24] sm:$0xf]
    %v428 = vld [vmem:[%s417 + $0x28] sm:$0xf]
    %v429 = vld [vmem:[%s417 + $0x2c] sm:$0xf]
    %v430 = vld [vmem:[%s417 + $0x30] sm:$0xf]
    %v431 = vld [vmem:[%s417 + $0x34] sm:$0xf]
    %v432 = vld [vmem:[%s417 + $0x38] sm:$0xf]
    %v433 = vld [vmem:[%s417 + $0x3c] sm:$0xf]
    %s434 = scalar_lea.vmem %s4, 1
    %v435 = vld [vmem:[%s434] sm:$0x1]
    %v437 = vlaneseq
    %v438 = vshrl.u32 %v437, 7
    %v439 = vsub.s32 0, %v438
    %v440 = vrot.slane %v435, %v439
    %v458 = vunpack.c.l.b16 %v418
    %v459 = vunpack.c.l.b16 %v419
    %v460 = vunpack.c.l.b16 %v420
    %v461 = vunpack.c.l.b16 %v421
    %v462 = vunpack.c.l.b16 %v422
    %v463 = vunpack.c.l.b16 %v423
    %v464 = vunpack.c.l.b16 %v424
    %v465 = vunpack.c.l.b16 %v425
    %v466 = vunpack.c.l.b16 %v426
    %v467 = vunpack.c.l.b16 %v427
    %v468 = vunpack.c.l.b16 %v428
    %v469 = vunpack.c.l.b16 %v429
    %v470 = vunpack.c.l.b16 %v430
    %v471 = vunpack.c.l.b16 %v431
    %v472 = vunpack.c.l.b16 %v432
    %v473 = vunpack.c.l.b16 %v433
    %v474 = vpack.c.b16 %v459, %v458
    %v475 = vpack.c.b16 %v461, %v460
    %v476 = vpack.c.b16 %v463, %v462
    %v477 = vpack.c.b16 %v465, %v464
    %v478 = vpack.c.b16 %v467, %v466
    %v479 = vpack.c.b16 %v469, %v468
    %v480 = vpack.c.b16 %v471, %v470
    %v481 = vpack.c.b16 %v473, %v472
    %490 = vmatprep.subr.bf16.mxu0 0
    %491 = vmatpush1.bf16.msra.mxu0 %v474
    %492 = vmatprep.subr.bf16.mxu0 0
    %493 = vmatpush1.bf16.msra.mxu0 %v475
    %494 = vmatprep.subr.bf16.mxu0 0
    %495 = vmatpush1.bf16.msra.mxu0 %v476
    %496 = vmatprep.subr.bf16.mxu0 0
    %497 = vmatpush1.bf16.msra.mxu0 %v477
    %498 = vmatprep.subr.bf16.mxu0 0
    %499 = vmatpush1.bf16.msra.mxu0 %v478
    %500 = vmatprep.subr.bf16.mxu0 0
    %501 = vmatpush1.bf16.msra.mxu0 %v479
    %502 = vmatprep.subr.bf16.mxu0 0
    %503 = vmatpush1.bf16.msra.mxu0 %v480
    %504 = vmatprep.subr.bf16.mxu0 0
    %505 = vmatpush1.bf16.msra.mxu0 %v481
    %506 = vmatprep.subr.bf16.mxu0 0
    %507 = vmatpush1.bf16.msra.mxu0 0
    %508 = vmatprep.subr.bf16.mxu0 0
    %509 = vmatpush1.bf16.msra.mxu0 0
    %510 = vmatprep.subr.bf16.mxu0 0
    %511 = vmatpush1.bf16.msra.mxu0 0
    %512 = vmatprep.subr.bf16.mxu0 0
    %513 = vmatpush1.bf16.msra.mxu0 0
    %514 = vmatprep.subr.bf16.mxu0 0
    %515 = vmatpush1.bf16.msra.mxu0 0
    %516 = vmatprep.subr.bf16.mxu0 0
    %517 = vmatpush1.bf16.msra.mxu0 0
    %518 = vmatprep.subr.bf16.mxu0 0
    %519 = vmatpush1.bf16.msra.mxu0 0
    %520 = vmatprep.subr.bf16.mxu0 0
    %521 = vmatpush1.bf16.msra.mxu0 0
    %522 = vmatprep.mubr.bf16.mxu0 0
    %523 = vmatmul.mubr.bf16.gmra.mrb[0].mxu0 %v416
    %v524 = vpop.f32.mrb[0].mxu0
    %v525 = vadd.f32 %v440, %v524
    %v526 = vpop.f32.mrb[0].mxu0
    %v527 = vpop.f32.mrb[0].mxu0
    %v528 = vadd.f32 %v440, %v527
    %v529 = vpop.f32.mrb[0].mxu0
    %530 = vdwg.mxu0
    %v531 = vmax.f32 %v525, 0.0
    %v532 = vmax.f32 %v528, 0.0
    %v533 = vpack.c.bf16 %v532, %v531
    %s534 = scalar_lea.vmem %s5, 64
    %v535 = vld [vmem:[%s534] sm:$0xf]
    %v536 = vld [vmem:[%s534 + $0x4] sm:$0xf]
    %v537 = vld [vmem:[%s534 + $0x8] sm:$0xf]
    %v538 = vld [vmem:[%s534 + $0xc] sm:$0xf]
    %v539 = vld [vmem:[%s534 + $0x10] sm:$0xf]
    %v540 = vld [vmem:[%s534 + $0x14] sm:$0xf]
    %v541 = vld [vmem:[%s534 + $0x18] sm:$0xf]
    %v542 = vld [vmem:[%s534 + $0x1c] sm:$0xf]
    %v543 = vld [vmem:[%s534 + $0x20] sm:$0xf]
    %v544 = vld [vmem:[%s534 + $0x24] sm:$0xf]
    %v545 = vld [vmem:[%s534 + $0x28] sm:$0xf]
    %v546 = vld [vmem:[%s534 + $0x2c] sm:$0xf]
    %v547 = vld [vmem:[%s534 + $0x30] sm:$0xf]
    %v548 = vld [vmem:[%s534 + $0x34] sm:$0xf]
    %v549 = vld [vmem:[%s534 + $0x38] sm:$0xf]
    %v550 = vld [vmem:[%s534 + $0x3c] sm:$0xf]
    %s551 = scalar_lea.vmem %s6, 1
    %v552 = vld [vmem:[%s551] sm:$0x1]
    %v554 = vlaneseq
    %v555 = vshrl.u32 %v554, 7
    %v556 = vsub.s32 0, %v555
    %v557 = vrot.slane %v552, %v556
    %v575 = vunpack.c.l.b16 %v535
    %v576 = vunpack.c.l.b16 %v536
    %v577 = vunpack.c.l.b16 %v537
    %v578 = vunpack.c.l.b16 %v538
    %v579 = vunpack.c.l.b16 %v539
    %v580 = vunpack.c.l.b16 %v540
    %v581 = vunpack.c.l.b16 %v541
    %v582 = vunpack.c.l.b16 %v542
    %v583 = vunpack.c.l.b16 %v543
    %v584 = vunpack.c.l.b16 %v544
    %v585 = vunpack.c.l.b16 %v545
    %v586 = vunpack.c.l.b16 %v546
    %v587 = vunpack.c.l.b16 %v547
    %v588 = vunpack.c.l.b16 %v548
    %v589 = vunpack.c.l.b16 %v549
    %v590 = vunpack.c.l.b16 %v550
    %v591 = vpack.c.b16 %v576, %v575
    %v592 = vpack.c.b16 %v578, %v577
    %v593 = vpack.c.b16 %v580, %v579
    %v594 = vpack.c.b16 %v582, %v581
    %v595 = vpack.c.b16 %v584, %v583
    %v596 = vpack.c.b16 %v586, %v585
    %v597 = vpack.c.b16 %v588, %v587
    %v598 = vpack.c.b16 %v590, %v589
    %607 = vmatprep.subr.bf16.mxu0 0
    %608 = vmatpush1.bf16.msra.mxu0 %v591
    %609 = vmatprep.subr.bf16.mxu0 0
    %610 = vmatpush1.bf16.msra.mxu0 %v592
    %611 = vmatprep.subr.bf16.mxu0 0
    %612 = vmatpush1.bf16.msra.mxu0 %v593
    %613 = vmatprep.subr.bf16.mxu0 0
    %614 = vmatpush1.bf16.msra.mxu0 %v594
    %615 = vmatprep.subr.bf16.mxu0 0
    %616 = vmatpush1.bf16.msra.mxu0 %v595
    %617 = vmatprep.subr.bf16.mxu0 0
    %618 = vmatpush1.bf16.msra.mxu0 %v596
    %619 = vmatprep.subr.bf16.mxu0 0
    %620 = vmatpush1.bf16.msra.mxu0 %v597
    %621 = vmatprep.subr.bf16.mxu0 0
    %622 = vmatpush1.bf16.msra.mxu0 %v598
    %623 = vmatprep.subr.bf16.mxu0 0
    %624 = vmatpush1.bf16.msra.mxu0 0
    %625 = vmatprep.subr.bf16.mxu0 0
    %626 = vmatpush1.bf16.msra.mxu0 0
    %627 = vmatprep.subr.bf16.mxu0 0
    %628 = vmatpush1.bf16.msra.mxu0 0
    %629 = vmatprep.subr.bf16.mxu0 0
    %630 = vmatpush1.bf16.msra.mxu0 0
    %631 = vmatprep.subr.bf16.mxu0 0
    %632 = vmatpush1.bf16.msra.mxu0 0
    %633 = vmatprep.subr.bf16.mxu0 0
    %634 = vmatpush1.bf16.msra.mxu0 0
    %635 = vmatprep.subr.bf16.mxu0 0
    %636 = vmatpush1.bf16.msra.mxu0 0
    %637 = vmatprep.subr.bf16.mxu0 0
    %638 = vmatpush1.bf16.msra.mxu0 0
    %639 = vmatprep.mubr.bf16.mxu0 0
    %640 = vmatmul.mubr.bf16.gmra.mrb[0].mxu0 %v533
    %v641 = vpop.f32.mrb[0].mxu0
    %v642 = vadd.f32 %v557, %v641
    %v643 = vpop.f32.mrb[0].mxu0
    %v644 = vpop.f32.mrb[0].mxu0
    %v645 = vadd.f32 %v557, %v644
    %v646 = vpop.f32.mrb[0].mxu0
    %647 = vdwg.mxu0
    %v648 = vmax.f32 %v642, 0.0
    %v649 = vmax.f32 %v645, 0.0
    %s650 = scalar_lea.vmem %s7, 1
    %v651 = vld [vmem:[%s650] sm:$0x1]
    %v653 = vlaneseq
    %v654 = vshrl.u32 %v653, 7
    %v655 = vsub.s32 0, %v654
    %v656 = vrot.slane %v651, %v655
    %v658 = vmul.f32 %v648, %v656
    %v659 = vmul.f32 %v649, %v656
    %s660 = scalar_lea.vmem %s8, 1
    %v661 = vld [vmem:[%s660] sm:$0x1]
    %v663 = vlaneseq
    %v664 = vshrl.u32 %v663, 7
    %v665 = vsub.s32 0, %v664
    %v666 = vrot.slane %v661, %v665
    %v668 = vadd.f32 %v658, %v666
    %v669 = vadd.f32 %v659, %v666
    %s670 = sld [smem:[#allocation2 + $0x2]]
    %s671 = sadd.f32 %s670, 1.0
    %v672 = vpack.c.bf16 %v669, %v668
    %v673 = vstv %s671
    %v674 = vmul.f32 %v673, %v668
    %v675 = vmul.f32 %v673, %v669
    %676 = vmatprep.subr.bf16.mxu0 0
    %677 = vmatpush1.bf16.msra.mxu0 %v672
    %678 = vmatprep.subr.bf16.mxu0 0
    %679 = vmatpush1.bf16.msra.mxu0 0
    %680 = vmatprep.subr.bf16.mxu0 0
    %681 = vmatpush1.bf16.msra.mxu0 0
    %682 = vmatprep.subr.bf16.mxu0 0
    %683 = vmatpush1.bf16.msra.mxu0 0
    %684 = vmatprep.subr.bf16.mxu0 0
    %685 = vmatpush1.bf16.msra.mxu0 0
    %686 = vmatprep.subr.bf16.mxu0 0
    %687 = vmatpush1.bf16.msra.mxu0 0
    %688 = vmatprep.subr.bf16.mxu0 0
    %689 = vmatpush1.bf16.msra.mxu0 0
    %690 = vmatprep.subr.bf16.mxu0 0
    %691 = vmatpush1.bf16.msra.mxu0 0
    %692 = vmatprep.subr.bf16.mxu0 0
    %693 = vmatpush1.bf16.msra.mxu0 0
    %694 = vmatprep.subr.bf16.mxu0 0
    %695 = vmatpush1.bf16.msra.mxu0 0
    %696 = vmatprep.subr.bf16.mxu0 0
    %697 = vmatpush1.bf16.msra.mxu0 0
    %698 = vmatprep.subr.bf16.mxu0 0
    %699 = vmatpush1.bf16.msra.mxu0 0
    %700 = vmatprep.subr.bf16.mxu0 0
    %701 = vmatpush1.bf16.msra.mxu0 0
    %702 = vmatprep.subr.bf16.mxu0 0
    %703 = vmatpush1.bf16.msra.mxu0 0
    %704 = vmatprep.subr.bf16.mxu0 0
    %705 = vmatpush1.bf16.msra.mxu0 0
    %706 = vmatprep.subr.bf16.mxu0 0
    %707 = vmatpush1.bf16.msra.mxu0 0
    %708 = vmatprep.mubr.bf16.mxu0 0
    %709 = vmatmul.mubr.bf16.gmra.mrb[0].mxu0 %v78
    %v710 = vpop.f32.mrb[0].mxu0
    %v711 = vadd.f32 %v674, %v710
    %v712 = vpop.f32.mrb[0].mxu0
    %v713 = vpop.f32.mrb[0].mxu0
    %v714 = vadd.f32 %v675, %v713
    %v715 = vpop.f32.mrb[0].mxu0
    %716 = vdwg.mxu0
    %v717 = vpack.c.bf16 %v714, %v711
    %s718 = scalar_lea.vmem %s3, 128
    %v719 = vld [vmem:[%s718] sm:$0xf]
    %v720 = vld [vmem:[%s718 + $0x4] sm:$0xf]
    %v721 = vld [vmem:[%s718 + $0x8] sm:$0xf]
    %v722 = vld [vmem:[%s718 + $0xc] sm:$0xf]
    %v723 = vld [vmem:[%s718 + $0x10] sm:$0xf]
    %v724 = vld [vmem:[%s718 + $0x14] sm:$0xf]
    %v725 = vld [vmem:[%s718 + $0x18] sm:$0xf]
    %v726 = vld [vmem:[%s718 + $0x1c] sm:$0xf]
    %v727 = vld [vmem:[%s718 + $0x20] sm:$0xf]
    %v728 = vld [vmem:[%s718 + $0x24] sm:$0xf]
    %v729 = vld [vmem:[%s718 + $0x28] sm:$0xf]
    %v730 = vld [vmem:[%s718 + $0x2c] sm:$0xf]
    %v731 = vld [vmem:[%s718 + $0x30] sm:$0xf]
    %v732 = vld [vmem:[%s718 + $0x34] sm:$0xf]
    %v733 = vld [vmem:[%s718 + $0x38] sm:$0xf]
    %v734 = vld [vmem:[%s718 + $0x3c] sm:$0xf]
    %s735 = scalar_lea.vmem %s4, 2
    %v736 = vld [vmem:[%s735] sm:$0x1]
    %v738 = vlaneseq
    %v739 = vshrl.u32 %v738, 7
    %v740 = vsub.s32 0, %v739
    %v741 = vrot.slane %v736, %v740
    %v759 = vunpack.c.l.b16 %v719
    %v760 = vunpack.c.l.b16 %v720
    %v761 = vunpack.c.l.b16 %v721
    %v762 = vunpack.c.l.b16 %v722
    %v763 = vunpack.c.l.b16 %v723
    %v764 = vunpack.c.l.b16 %v724
    %v765 = vunpack.c.l.b16 %v725
    %v766 = vunpack.c.l.b16 %v726
    %v767 = vunpack.c.l.b16 %v727
    %v768 = vunpack.c.l.b16 %v728
    %v769 = vunpack.c.l.b16 %v729
    %v770 = vunpack.c.l.b16 %v730
    %v771 = vunpack.c.l.b16 %v731
    %v772 = vunpack.c.l.b16 %v732
    %v773 = vunpack.c.l.b16 %v733
    %v774 = vunpack.c.l.b16 %v734
    %v775 = vpack.c.b16 %v760, %v759
    %v776 = vpack.c.b16 %v762, %v761
    %v777 = vpack.c.b16 %v764, %v763
    %v778 = vpack.c.b16 %v766, %v765
    %v779 = vpack.c.b16 %v768, %v767
    %v780 = vpack.c.b16 %v770, %v769
    %v781 = vpack.c.b16 %v772, %v771
    %v782 = vpack.c.b16 %v774, %v773
    %791 = vmatprep.subr.bf16.mxu0 0
    %792 = vmatpush1.bf16.msra.mxu0 %v775
    %793 = vmatprep.subr.bf16.mxu0 0
    %794 = vmatpush1.bf16.msra.mxu0 %v776
    %795 = vmatprep.subr.bf16.mxu0 0
    %796 = vmatpush1.bf16.msra.mxu0 %v777
    %797 = vmatprep.subr.bf16.mxu0 0
    %798 = vmatpush1.bf16.msra.mxu0 %v778
    %799 = vmatprep.subr.bf16.mxu0 0
    %800 = vmatpush1.bf16.msra.mxu0 %v779
    %801 = vmatprep.subr.bf16.mxu0 0
    %802 = vmatpush1.bf16.msra.mxu0 %v780
    %803 = vmatprep.subr.bf16.mxu0 0
    %804 = vmatpush1.bf16.msra.mxu0 %v781
    %805 = vmatprep.subr.bf16.mxu0 0
    %806 = vmatpush1.bf16.msra.mxu0 %v782
    %807 = vmatprep.subr.bf16.mxu0 0
    %808 = vmatpush1.bf16.msra.mxu0 0
    %809 = vmatprep.subr.bf16.mxu0 0
    %810 = vmatpush1.bf16.msra.mxu0 0
    %811 = vmatprep.subr.bf16.mxu0 0
    %812 = vmatpush1.bf16.msra.mxu0 0
    %813 = vmatprep.subr.bf16.mxu0 0
    %814 = vmatpush1.bf16.msra.mxu0 0
    %815 = vmatprep.subr.bf16.mxu0 0
    %816 = vmatpush1.bf16.msra.mxu0 0
    %817 = vmatprep.subr.bf16.mxu0 0
    %818 = vmatpush1.bf16.msra.mxu0 0
    %819 = vmatprep.subr.bf16.mxu0 0
    %820 = vmatpush1.bf16.msra.mxu0 0
    %821 = vmatprep.subr.bf16.mxu0 0
    %822 = vmatpush1.bf16.msra.mxu0 0
    %823 = vmatprep.mubr.bf16.mxu0 0
    %824 = vmatmul.mubr.bf16.gmra.mrb[0].mxu0 %v717
    %v825 = vpop.f32.mrb[0].mxu0
    %v826 = vadd.f32 %v741, %v825
    %v827 = vpop.f32.mrb[0].mxu0
    %v828 = vpop.f32.mrb[0].mxu0
    %v829 = vadd.f32 %v741, %v828
    %v830 = vpop.f32.mrb[0].mxu0
    %831 = vdwg.mxu0
    %v832 = vmax.f32 %v826, 0.0
    %v833 = vmax.f32 %v829, 0.0
    %v834 = vpack.c.bf16 %v833, %v832
    %s835 = scalar_lea.vmem %s5, 128
    %v836 = vld [vmem:[%s835] sm:$0xf]
    %v837 = vld [vmem:[%s835 + $0x4] sm:$0xf]
    %v838 = vld [vmem:[%s835 + $0x8] sm:$0xf]
    %v839 = vld [vmem:[%s835 + $0xc] sm:$0xf]
    %v840 = vld [vmem:[%s835 + $0x10] sm:$0xf]
    %v841 = vld [vmem:[%s835 + $0x14] sm:$0xf]
    %v842 = vld [vmem:[%s835 + $0x18] sm:$0xf]
    %v843 = vld [vmem:[%s835 + $0x1c] sm:$0xf]
    %v844 = vld [vmem:[%s835 + $0x20] sm:$0xf]
    %v845 = vld [vmem:[%s835 + $0x24] sm:$0xf]
    %v846 = vld [vmem:[%s835 + $0x28] sm:$0xf]
    %v847 = vld [vmem:[%s835 + $0x2c] sm:$0xf]
    %v848 = vld [vmem:[%s835 + $0x30] sm:$0xf]
    %v849 = vld [vmem:[%s835 + $0x34] sm:$0xf]
    %v850 = vld [vmem:[%s835 + $0x38] sm:$0xf]
    %v851 = vld [vmem:[%s835 + $0x3c] sm:$0xf]
    %s852 = scalar_lea.vmem %s6, 2
    %v853 = vld [vmem:[%s852] sm:$0x1]
    %v855 = vlaneseq
    %v856 = vshrl.u32 %v855, 7
    %v857 = vsub.s32 0, %v856
    %v858 = vrot.slane %v853, %v857
    %v876 = vunpack.c.l.b16 %v836
    %v877 = vunpack.c.l.b16 %v837
    %v878 = vunpack.c.l.b16 %v838
    %v879 = vunpack.c.l.b16 %v839
    %v880 = vunpack.c.l.b16 %v840
    %v881 = vunpack.c.l.b16 %v841
    %v882 = vunpack.c.l.b16 %v842
    %v883 = vunpack.c.l.b16 %v843
    %v884 = vunpack.c.l.b16 %v844
    %v885 = vunpack.c.l.b16 %v845
    %v886 = vunpack.c.l.b16 %v846
    %v887 = vunpack.c.l.b16 %v847
    %v888 = vunpack.c.l.b16 %v848
    %v889 = vunpack.c.l.b16 %v849
    %v890 = vunpack.c.l.b16 %v850
    %v891 = vunpack.c.l.b16 %v851
    %v892 = vpack.c.b16 %v877, %v876
    %v893 = vpack.c.b16 %v879, %v878
    %v894 = vpack.c.b16 %v881, %v880
    %v895 = vpack.c.b16 %v883, %v882
    %v896 = vpack.c.b16 %v885, %v884
    %v897 = vpack.c.b16 %v887, %v886
    %v898 = vpack.c.b16 %v889, %v888
    %v899 = vpack.c.b16 %v891, %v890
    %908 = vmatprep.subr.bf16.mxu0 0
    %909 = vmatpush1.bf16.msra.mxu0 %v892
    %910 = vmatprep.subr.bf16.mxu0 0
    %911 = vmatpush1.bf16.msra.mxu0 %v893
    %912 = vmatprep.subr.bf16.mxu0 0
    %913 = vmatpush1.bf16.msra.mxu0 %v894
    %914 = vmatprep.subr.bf16.mxu0 0
    %915 = vmatpush1.bf16.msra.mxu0 %v895
    %916 = vmatprep.subr.bf16.mxu0 0
    %917 = vmatpush1.bf16.msra.mxu0 %v896
    %918 = vmatprep.subr.bf16.mxu0 0
    %919 = vmatpush1.bf16.msra.mxu0 %v897
    %920 = vmatprep.subr.bf16.mxu0 0
    %921 = vmatpush1.bf16.msra.mxu0 %v898
    %922 = vmatprep.subr.bf16.mxu0 0
    %923 = vmatpush1.bf16.msra.mxu0 %v899
    %924 = vmatprep.subr.bf16.mxu0 0
    %925 = vmatpush1.bf16.msra.mxu0 0
    %926 = vmatprep.subr.bf16.mxu0 0
    %927 = vmatpush1.bf16.msra.mxu0 0
    %928 = vmatprep.subr.bf16.mxu0 0
    %929 = vmatpush1.bf16.msra.mxu0 0
    %930 = vmatprep.subr.bf16.mxu0 0
    %931 = vmatpush1.bf16.msra.mxu0 0
    %932 = vmatprep.subr.bf16.mxu0 0
    %933 = vmatpush1.bf16.msra.mxu0 0
    %934 = vmatprep.subr.bf16.mxu0 0
    %935 = vmatpush1.bf16.msra.mxu0 0
    %936 = vmatprep.subr.bf16.mxu0 0
    %937 = vmatpush1.bf16.msra.mxu0 0
    %938 = vmatprep.subr.bf16.mxu0 0
    %939 = vmatpush1.bf16.msra.mxu0 0
    %940 = vmatprep.mubr.bf16.mxu0 0
    %941 = vmatmul.mubr.bf16.gmra.mrb[0].mxu0 %v834
    %v942 = vpop.f32.mrb[0].mxu0
    %v943 = vadd.f32 %v858, %v942
    %v944 = vpop.f32.mrb[0].mxu0
    %v945 = vpop.f32.mrb[0].mxu0
    %v946 = vadd.f32 %v858, %v945
    %v947 = vpop.f32.mrb[0].mxu0
    %948 = vdwg.mxu0
    %v949 = vmax.f32 %v943, 0.0
    %v950 = vmax.f32 %v946, 0.0
    %s951 = scalar_lea.vmem %s7, 2
    %v952 = vld [vmem:[%s951] sm:$0x1]
    %v954 = vlaneseq
    %v955 = vshrl.u32 %v954, 7
    %v956 = vsub.s32 0, %v955
    %v957 = vrot.slane %v952, %v956
    %v959 = vmul.f32 %v949, %v957
    %v960 = vmul.f32 %v950, %v957
    %s961 = scalar_lea.vmem %s8, 2
    %v962 = vld [vmem:[%s961] sm:$0x1]
    %v964 = vlaneseq
    %v965 = vshrl.u32 %v964, 7
    %v966 = vsub.s32 0, %v965
    %v967 = vrot.slane %v962, %v966
    %v969 = vadd.f32 %v959, %v967
    %v970 = vadd.f32 %v960, %v967
    %v971 = vld [vmem:[%s9] sm:$0xf]
    %v972 = vpack.c.bf16 %v970, %v969
    %v974 = vsel %vm76, %v971, 0
    %976 = vmatprep.subr.bf16.mxu0 0
    %977 = vmatpush1.bf16.msra.mxu0 %v972
    %978 = vmatprep.subr.bf16.mxu0 0
    %979 = vmatpush1.bf16.msra.mxu0 0
    %980 = vmatprep.subr.bf16.mxu0 0
    %981 = vmatpush1.bf16.msra.mxu0 0
    %982 = vmatprep.subr.bf16.mxu0 0
    %983 = vmatpush1.bf16.msra.mxu0 0
    %984 = vmatprep.subr.bf16.mxu0 0
    %985 = vmatpush1.bf16.msra.mxu0 0
    %986 = vmatprep.subr.bf16.mxu0 0
    %987 = vmatpush1.bf16.msra.mxu0 0
    %988 = vmatprep.subr.bf16.mxu0 0
    %989 = vmatpush1.bf16.msra.mxu0 0
    %990 = vmatprep.subr.bf16.mxu0 0
    %991 = vmatpush1.bf16.msra.mxu0 0
    %992 = vmatprep.subr.bf16.mxu0 0
    %993 = vmatpush1.bf16.msra.mxu0 0
    %994 = vmatprep.subr.bf16.mxu0 0
    %995 = vmatpush1.bf16.msra.mxu0 0
    %996 = vmatprep.subr.bf16.mxu0 0
    %997 = vmatpush1.bf16.msra.mxu0 0
    %998 = vmatprep.subr.bf16.mxu0 0
    %999 = vmatpush1.bf16.msra.mxu0 0
    %1000 = vmatprep.subr.bf16.mxu0 0
    %1001 = vmatpush1.bf16.msra.mxu0 0
    %1002 = vmatprep.subr.bf16.mxu0 0
    %1003 = vmatpush1.bf16.msra.mxu0 0
    %1004 = vmatprep.subr.bf16.mxu0 0
    %1005 = vmatpush1.bf16.msra.mxu0 0
    %1006 = vmatprep.subr.bf16.mxu0 0
    %1007 = vmatpush1.bf16.msra.mxu0 0
    %1008 = vmatprep.mubr.bf16.mxu0 0
    %1009 = vmatmul.mubr.bf16.gmra.mrb[0].mxu0 %v974
    %v1010 = vpop.f32.mrb[0].mxu0
    %v1011 = vadd.f32 0.0, %v1010
    %v1012 = vpop.f32.mrb[0].mxu0
    %v1013 = vpop.f32.mrb[0].mxu0
    %v1014 = vpop.f32.mrb[0].mxu0
    %1015 = vdwg.mxu0
    %v1016 = vpack.c.bf16 %v1011, %v1011
    %v1017 = vld [vmem:[%s10] sm:$0xf]
    %v1018 = vld [vmem:[%s10 + $0x4] sm:$0xf]
    %v1019 = vld [vmem:[%s10 + $0x8] sm:$0xf]
    %v1020 = vld [vmem:[%s10 + $0xc] sm:$0xf]
    %v1021 = vld [vmem:[%s10 + $0x10] sm:$0xf]
    %v1022 = vld [vmem:[%s10 + $0x14] sm:$0xf]
    %v1023 = vld [vmem:[%s10 + $0x18] sm:$0xf]
    %v1024 = vld [vmem:[%s10 + $0x1c] sm:$0xf]
    %v1025 = vld [vmem:[%s10 + $0x20] sm:$0xf]
    %v1026 = vld [vmem:[%s10 + $0x24] sm:$0xf]
    %v1027 = vld [vmem:[%s10 + $0x28] sm:$0xf]
    %v1028 = vld [vmem:[%s10 + $0x2c] sm:$0xf]
    %v1029 = vld [vmem:[%s10 + $0x30] sm:$0xf]
    %v1030 = vld [vmem:[%s10 + $0x34] sm:$0xf]
    %v1031 = vld [vmem:[%s10 + $0x38] sm:$0xf]
    %v1032 = vld [vmem:[%s10 + $0x3c] sm:$0xf]
    %v1033 = vld [vmem:[%s11] sm:$0x1]
    %v1035 = vlaneseq
    %v1036 = vshrl.u32 %v1035, 7
    %v1037 = vsub.s32 0, %v1036
    %v1038 = vrot.slane %v1033, %v1037
    %v1056 = vunpack.c.l.b16 %v1017
    %v1057 = vunpack.c.l.b16 %v1018
    %v1058 = vunpack.c.l.b16 %v1019
    %v1059 = vunpack.c.l.b16 %v1020
    %v1060 = vunpack.c.l.b16 %v1021
    %v1061 = vunpack.c.l.b16 %v1022
    %v1062 = vunpack.c.l.b16 %v1023
    %v1063 = vunpack.c.l.b16 %v1024
    %v1064 = vunpack.c.l.b16 %v1025
    %v1065 = vunpack.c.l.b16 %v1026
    %v1066 = vunpack.c.l.b16 %v1027
    %v1067 = vunpack.c.l.b16 %v1028
    %v1068 = vunpack.c.l.b16 %v1029
    %v1069 = vunpack.c.l.b16 %v1030
    %v1070 = vunpack.c.l.b16 %v1031
    %v1071 = vunpack.c.l.b16 %v1032
    %v1072 = vpack.c.b16 %v1057, %v1056
    %v1073 = vpack.c.b16 %v1059, %v1058
    %v1074 = vpack.c.b16 %v1061, %v1060
    %v1075 = vpack.c.b16 %v1063, %v1062
    %v1076 = vpack.c.b16 %v1065, %v1064
    %v1077 = vpack.c.b16 %v1067, %v1066
    %v1078 = vpack.c.b16 %v1069, %v1068
    %v1079 = vpack.c.b16 %v1071, %v1070
    %1088 = vmatprep.subr.bf16.mxu0 0
    %1089 = vmatpush1.bf16.msra.mxu0 %v1072
    %1090 = vmatprep.subr.bf16.mxu0 0
    %1091 = vmatpush1.bf16.msra.mxu0 %v1073
    %1092 = vmatprep.subr.bf16.mxu0 0
    %1093 = vmatpush1.bf16.msra.mxu0 %v1074
    %1094 = vmatprep.subr.bf16.mxu0 0
    %1095 = vmatpush1.bf16.msra.mxu0 %v1075
    %1096 = vmatprep.subr.bf16.mxu0 0
    %1097 = vmatpush1.bf16.msra.mxu0 %v1076
    %1098 = vmatprep.subr.bf16.mxu0 0
    %1099 = vmatpush1.bf16.msra.mxu0 %v1077
    %1100 = vmatprep.subr.bf16.mxu0 0
    %1101 = vmatpush1.bf16.msra.mxu0 %v1078
    %1102 = vmatprep.subr.bf16.mxu0 0
    %1103 = vmatpush1.bf16.msra.mxu0 %v1079
    %1104 = vmatprep.subr.bf16.mxu0 0
    %1105 = vmatpush1.bf16.msra.mxu0 0
    %1106 = vmatprep.subr.bf16.mxu0 0
    %1107 = vmatpush1.bf16.msra.mxu0 0
    %1108 = vmatprep.subr.bf16.mxu0 0
    %1109 = vmatpush1.bf16.msra.mxu0 0
    %1110 = vmatprep.subr.bf16.mxu0 0
    %1111 = vmatpush1.bf16.msra.mxu0 0
    %1112 = vmatprep.subr.bf16.mxu0 0
    %1113 = vmatpush1.bf16.msra.mxu0 0
    %1114 = vmatprep.subr.bf16.mxu0 0
    %1115 = vmatpush1.bf16.msra.mxu0 0
    %1116 = vmatprep.subr.bf16.mxu0 0
    %1117 = vmatpush1.bf16.msra.mxu0 0
    %1118 = vmatprep.subr.bf16.mxu0 0
    %1119 = vmatpush1.bf16.msra.mxu0 0
    %1120 = vmatprep.mubr.bf16.mxu0 0
    %1121 = vmatmul.mubr.bf16.gmra.mrb[0].mxu0 %v1016
    %v1122 = vpop.f32.mrb[0].mxu0
    %v1123 = vadd.f32 %v1038, %v1122
    %v1124 = vpop.f32.mrb[0].mxu0
    %v1125 = vpop.f32.mrb[0].mxu0
    %v1126 = vpop.f32.mrb[0].mxu0
    %1127 = vdwg.mxu0
    %v1128 = vmax.f32 %v1123, 0.0
    %v1129 = vpack.c.bf16 %v1128, %v1128
    %v1130 = vld [vmem:[%s12] sm:$0xf]
    %v1131 = vld [vmem:[%s12 + $0x4] sm:$0xf]
    %v1132 = vld [vmem:[%s12 + $0x8] sm:$0xf]
    %v1133 = vld [vmem:[%s12 + $0xc] sm:$0xf]
    %v1134 = vld [vmem:[%s12 + $0x10] sm:$0xf]
    %v1135 = vld [vmem:[%s12 + $0x14] sm:$0xf]
    %v1136 = vld [vmem:[%s12 + $0x18] sm:$0xf]
    %v1137 = vld [vmem:[%s12 + $0x1c] sm:$0xf]
    %v1138 = vld [vmem:[%s12 + $0x20] sm:$0xf]
    %v1139 = vld [vmem:[%s12 + $0x24] sm:$0xf]
    %v1140 = vld [vmem:[%s12 + $0x28] sm:$0xf]
    %v1141 = vld [vmem:[%s12 + $0x2c] sm:$0xf]
    %v1142 = vld [vmem:[%s12 + $0x30] sm:$0xf]
    %v1143 = vld [vmem:[%s12 + $0x34] sm:$0xf]
    %v1144 = vld [vmem:[%s12 + $0x38] sm:$0xf]
    %v1145 = vld [vmem:[%s12 + $0x3c] sm:$0xf]
    %v1146 = vld [vmem:[%s13] sm:$0x1]
    %v1148 = vlaneseq
    %v1149 = vshrl.u32 %v1148, 7
    %v1150 = vsub.s32 0, %v1149
    %v1151 = vrot.slane %v1146, %v1150
    %v1169 = vunpack.c.l.b16 %v1130
    %v1170 = vunpack.c.l.b16 %v1131
    %v1171 = vunpack.c.l.b16 %v1132
    %v1172 = vunpack.c.l.b16 %v1133
    %v1173 = vunpack.c.l.b16 %v1134
    %v1174 = vunpack.c.l.b16 %v1135
    %v1175 = vunpack.c.l.b16 %v1136
    %v1176 = vunpack.c.l.b16 %v1137
    %v1177 = vunpack.c.l.b16 %v1138
    %v1178 = vunpack.c.l.b16 %v1139
    %v1179 = vunpack.c.l.b16 %v1140
    %v1180 = vunpack.c.l.b16 %v1141
    %v1181 = vunpack.c.l.b16 %v1142
    %v1182 = vunpack.c.l.b16 %v1143
    %v1183 = vunpack.c.l.b16 %v1144
    %v1184 = vunpack.c.l.b16 %v1145
    %v1185 = vpack.c.b16 %v1170, %v1169
    %v1186 = vpack.c.b16 %v1172, %v1171
    %v1187 = vpack.c.b16 %v1174, %v1173
    %v1188 = vpack.c.b16 %v1176, %v1175
    %v1189 = vpack.c.b16 %v1178, %v1177
    %v1190 = vpack.c.b16 %v1180, %v1179
    %v1191 = vpack.c.b16 %v1182, %v1181
    %v1192 = vpack.c.b16 %v1184, %v1183
    %1201 = vmatprep.subr.bf16.mxu0 0
    %1202 = vmatpush1.bf16.msra.mxu0 %v1185
    %1203 = vmatprep.subr.bf16.mxu0 0
    %1204 = vmatpush1.bf16.msra.mxu0 %v1186
    %1205 = vmatprep.subr.bf16.mxu0 0
    %1206 = vmatpush1.bf16.msra.mxu0 %v1187
    %1207 = vmatprep.subr.bf16.mxu0 0
    %1208 = vmatpush1.bf16.msra.mxu0 %v1188
    %1209 = vmatprep.subr.bf16.mxu0 0
    %1210 = vmatpush1.bf16.msra.mxu0 %v1189
    %1211 = vmatprep.subr.bf16.mxu0 0
    %1212 = vmatpush1.bf16.msra.mxu0 %v1190
    %1213 = vmatprep.subr.bf16.mxu0 0
    %1214 = vmatpush1.bf16.msra.mxu0 %v1191
    %1215 = vmatprep.subr.bf16.mxu0 0
    %1216 = vmatpush1.bf16.msra.mxu0 %v1192
    %1217 = vmatprep.subr.bf16.mxu0 0
    %1218 = vmatpush1.bf16.msra.mxu0 0
    %1219 = vmatprep.subr.bf16.mxu0 0
    %1220 = vmatpush1.bf16.msra.mxu0 0
    %1221 = vmatprep.subr.bf16.mxu0 0
    %1222 = vmatpush1.bf16.msra.mxu0 0
    %1223 = vmatprep.subr.bf16.mxu0 0
    %1224 = vmatpush1.bf16.msra.mxu0 0
    %1225 = vmatprep.subr.bf16.mxu0 0
    %1226 = vmatpush1.bf16.msra.mxu0 0
    %1227 = vmatprep.subr.bf16.mxu0 0
    %1228 = vmatpush1.bf16.msra.mxu0 0
    %1229 = vmatprep.subr.bf16.mxu0 0
    %1230 = vmatpush1.bf16.msra.mxu0 0
    %1231 = vmatprep.subr.bf16.mxu0 0
    %1232 = vmatpush1.bf16.msra.mxu0 0
    %1233 = vmatprep.mubr.bf16.mxu0 0
    %1234 = vmatmul.mubr.bf16.gmra.mrb[0].mxu0 %v1129
    %v1235 = vpop.f32.mrb[0].mxu0
    %v1236 = vadd.f32 %v1151, %v1235
    %v1237 = vpop.f32.mrb[0].mxu0
    %v1238 = vpop.f32.mrb[0].mxu0
    %v1239 = vpop.f32.mrb[0].mxu0
    %1240 = vdwg.mxu0
    %v1241 = vlaneseq
    %v1242 = vand.u32 %v1241, 127
    %vm1243 = vcmp.lt.s32.totalorder %v1242, 4
    %v1244 = vsel %vm1243, %v1236, -1e+30
    %1245 = vmax.xlane.f32.xlu0 %v1244
    %v1246 = vpop.xlane.xlu0 %1245
    %v1247 = vsub.f32 %v1244, %v1246
    %v1248 = vmul.f32 %v1247, 1.442695
    %v1249 = vpow.pop %v1248
    %1250 = vadd.xlane.f32.xlu0 %v1249
    %v1251 = vpop.xlane.xlu0 %1250
    %v1252 = vlog2.pop %v1251
    %v1253 = vmul.f32 %v1252, 0.6931472
    %v1254 = vsub.f32 %v1247, %v1253
    %1255 = vst [vmem:[%s14] sm:$0xff] %v1254
    // Predicated region
    $region62: #{gin2_forward.1} parent=1 // pred_check
      _
    $region63: #{gin2_forward.1} parent=1 // pred_check_branch
      %1257 = sbr.rel (0) target = $region65
    $region64: #{gin2_forward.1} parent=1 // pred_region
      _
    $region65: #{gin2_forward.1} parent=1 // pred_fallthru
      _
    // Predicated region
    $region66: #{gin2_forward.1} parent=1 // pred_check
      _
    $region67: #{gin2_forward.1} parent=1 // pred_check_branch
      %1259 = sbr.rel (0) target = $region69
    $region68: #{gin2_forward.1} parent=1 // pred_region
      _
    $region69: #{gin2_forward.1} parent=1 // pred_fallthru
      _
    %1260 = vsyncpa [#allocation3], 1

</llo_original>
